<compile_context>
chip_gen: v7x
topology: tpu7x:2x2x1
jax: 0.10.0
libtpu: 0.0.40
codegen_flags: <defaults>
</compile_context>

<pallas_src>
import functools

import jax
import jax.numpy as jnp
import numpy as np
from jax.experimental import pallas as pl
from jax.experimental.pallas import tpu as pltpu


def dwconv_block_kernel(x_ref, w3_ref, w1_ref, sh_ref, o_ref, *, L, Wp):
    """Fused conv3x3+BN1+ReLU -> conv1x1+BN2+ReLU for one image.

    x_ref  : (Cin, Lext)     zero-padded, flattened image; Lext = L + 2*(Wp+1)
    w3_ref : (9, Cout, Cin)  3x3 taps (k = kh*3 + kw), BN1 scale pre-folded
    w1_ref : (Cout, Cout)    1x1 weights, BN2 scale pre-folded
    sh_ref : (Cout, 2)       col 0 = BN1 shift (+conv bias), col 1 = BN2 shift
    o_ref  : (Cout, L)       output over the padded spatial grid (L = Hp*Wp);
                             boundary rows/cols are garbage, sliced off outside
    """
    # In-kernel im2col: 9 statically-offset lane slices of the resident block,
    # each driving one K=Cin MXU matmul, accumulated in f32.
    acc = None
    for kh in range(3):
        for kw in range(3):
            start = kh * Wp + kw                      # static lane offset
            tap = x_ref[:, start:start + L]           # (Cin, L)
            z = jnp.dot(w3_ref[kh * 3 + kw], tap,
                        preferred_element_type=jnp.float32)
            acc = z if acc is None else acc + z
    # BN1 (folded) + ReLU, f32 VPU math, lane-dense.
    y1 = jnp.maximum(acc + sh_ref[:, 0:1], 0.0)
    # 1x1 conv == channel matmul, then BN2 (folded) + ReLU.
    z2 = jnp.dot(w1_ref[...], y1.astype(w1_ref.dtype),
                 preferred_element_type=jnp.float32)
    o_ref[...] = jnp.maximum(z2 + sh_ref[:, 1:2], 0.0).astype(o_ref.dtype)


@functools.partial(jax.jit, static_argnames=("mxu_dtype",))
def dwconv_block(x_nchw, params, *, mxu_dtype=jnp.bfloat16):
    """PyTorch-style NCHW in/out. BatchNorm in eval mode (running stats folded)."""
    (conv_w, conv_b, g1, be1, m1, v1, conv1x1_w, g2, be2, m2, v2) = params
    eps = 1e-5

    Cout, Cin, KH, KW = conv_w.shape
    N, _, H, W = x_nchw.shape
    Hp, Wp = H + 2, W + 2          # pad=1 on each spatial side
    L = Hp * Wp                    # flattened padded spatial size per image
    halo = Wp + 1                  # extra lane halo so all 9 tap slices are in-bounds
    Lext = L + 2 * halo

    # ---- fold eval-mode BN (and conv bias) into weights / shifts -------------
    s1 = g1 / jnp.sqrt(v1 + eps)
    sh1 = (be1 - m1 * s1) + conv_b * s1            # shift1' = sh1 + bias * s1
    s2 = g2 / jnp.sqrt(v2 + eps)
    sh2 = be2 - m2 * s2

    # (9, Cout, Cin) taps, k = kh*3 + kw, BN1 scale folded into output rows.
    w3 = jnp.transpose(conv_w, (2, 3, 0, 1)).reshape(KH * KW, Cout, Cin)
    w3 = (w3 * s1[None, :, None]).astype(mxu_dtype)
    # 1x1 weights (Cout_out, Cout_in), BN2 scale folded.
    w1 = (conv1x1_w[:, :, 0, 0] * s2[:, None]).astype(mxu_dtype)
    # Both shifts packed into one (Cout, 2) f32 array.
    shifts = jnp.stack([sh1, sh2], axis=1).astype(jnp.float32)

    # ---- single zero-pad in the MXU dtype; NO im2col materialization --------
    x = x_nchw.astype(mxu_dtype)
    xp = jnp.pad(x, ((0, 0), (0, 0), (1, 1), (1, 1)))        # (N, Cin, Hp, Wp)
    xf = xp.reshape(N, Cin, L)
    xf = jnp.pad(xf, ((0, 0), (0, 0), (halo, halo)))         # (N, Cin, Lext)

    # ---- explicit VMEM limit from the per-step working set -------------------
    in_b = np.dtype(mxu_dtype).itemsize
    per_step = (
        2 * Cin * Lext * in_b                       # double-buffered input block
        + 2 * Cout * L * 4                          # double-buffered output block
        + 2 * (KH * KW * Cout * Cin + Cout * Cout) * in_b + 2 * Cout * 2 * 4
        + Cin * L * in_b + 3 * Cout * L * 4)        # in-kernel tap/acc/y1 slack
    vmem_limit = int(min(64 * 2 ** 20, max(32 * 2 ** 20, 2 * per_step)))

    kernel = functools.partial(dwconv_block_kernel, L=L, Wp=Wp)

    out_flat = pl.pallas_call(
        kernel,
        out_shape=jax.ShapeDtypeStruct((N, Cout, L), jnp.float32),
        grid_spec=pltpu.PrefetchScalarGridSpec(
            num_scalar_prefetch=0,
            grid=(N,),                                       # one image per step
            in_specs=[
                pl.BlockSpec((None, Cin, Lext), lambda n: (n, 0, 0)),      # input
                pl.BlockSpec((KH * KW, Cout, Cin), lambda n: (0, 0, 0)),   # 3x3 taps
                pl.BlockSpec((Cout, Cout), lambda n: (0, 0)),              # 1x1
                pl.BlockSpec((Cout, 2), lambda n: (0, 0)),                 # shifts
            ],
            out_specs=pl.BlockSpec((None, Cout, L), lambda n: (n, 0, 0)),
        ),
        compiler_params=pltpu.CompilerParams(
            dimension_semantics=("parallel",),
            vmem_limit_bytes=vmem_limit),
    )(xf, w3, w1, shifts)

    # Padded channels-major layout -> NCHW via a cheap slice (no transpose pass).
    out = out_flat.reshape(N, Cout, Hp, Wp)[:, :, 1:H + 1, 1:W + 1]
    return out


def reference_jax(x_nchw, params):
    """Pure-JAX reference (NCHW, matches PyTorch eval-mode forward)."""
    (conv_w, conv_b, g1, be1, m1, v1, conv1x1_w, g2, be2, m2, v2) = params
    eps = 1e-5
    y = jax.lax.conv_general_dilated(
        x_nchw, conv_w, window_strides=(1, 1), padding=((1, 1), (1, 1)),
        dimension_numbers=("NCHW", "OIHW", "NCHW"))
    y = y + conv_b[None, :, None, None]
    y = (y - m1[None, :, None, None]) / jnp.sqrt(v1[None, :, None, None] + eps)
    y = y * g1[None, :, None, None] + be1[None, :, None, None]
    y = jnp.maximum(y, 0.0)
    y = jax.lax.conv_general_dilated(
        y, conv1x1_w, window_strides=(1, 1), padding=((0, 0), (0, 0)),
        dimension_numbers=("NCHW", "OIHW", "NCHW"))
    y = (y - m2[None, :, None, None]) / jnp.sqrt(v2[None, :, None, None] + eps)
    y = y * g2[None, :, None, None] + be2[None, :, None, None]
    return jnp.maximum(y, 0.0)


if __name__ == "__main__":
    # DwConvBlock(bottom=4, nout=8, kernel_size=3, stride=1, padding=1,
    #             bias=True, groups=1)
    N, Cin, H, W = 2, 4, 16, 16
    Cout = 8

    key = jax.random.PRNGKey(0)
    ks = jax.random.split(key, 9)

    conv_w = 0.1 * jax.random.normal(ks[0], (Cout, Cin, 3, 3), jnp.float32)
    conv_b = 0.1 * jax.random.normal(ks[1], (Cout,), jnp.float32)
    g1 = 1.0 + 0.1 * jax.random.normal(ks[2], (Cout,), jnp.float32)
    be1 = 0.1 * jax.random.normal(ks[3], (Cout,), jnp.float32)
    m1 = 0.05 * jax.random.normal(ks[4], (Cout,), jnp.float32)
    v1 = jnp.abs(1.0 + 0.1 * jax.random.normal(ks[5], (Cout,), jnp.float32))
    conv1x1_w = 0.1 * jax.random.normal(ks[6], (Cout, Cout, 1, 1), jnp.float32)
    g2 = 1.0 + 0.05 * jax.random.normal(ks[7], (Cout,), jnp.float32)
    be2 = 0.02 * jnp.arange(Cout, dtype=jnp.float32)
    m2 = 0.01 * jnp.arange(Cout, dtype=jnp.float32)
    v2 = 1.0 + 0.01 * jnp.arange(Cout, dtype=jnp.float32)

    params = (conv_w, conv_b, g1, be1, m1, v1, conv1x1_w, g2, be2, m2, v2)
    x = jax.random.normal(ks[8], (N, Cin, H, W), jnp.float32)

    ref = jax.block_until_ready(reference_jax(x, params))

    # f32 path: faithful to the PyTorch module numerics.
    out_f32 = jax.block_until_ready(dwconv_block(x, params, mxu_dtype=jnp.float32))
    np.testing.assert_allclose(np.asarray(out_f32), np.asarray(ref),
                               rtol=1e-4, atol=1e-4)

    # Default path: bf16 MXU operands, f32 accumulation + f32 BN/ReLU math.
    out_bf16 = jax.block_until_ready(dwconv_block(x, params))
    np.testing.assert_allclose(np.asarray(out_bf16), np.asarray(ref),
                               rtol=5e-2, atol=5e-2)

    print("KERNEL_OK")
</pallas_src>

<mosaic_0001>
module attributes {stable_mosaic.version = 11 : i64} {
  func.func @dwconv_block_kernel(%arg0: i32, %arg1: memref<1x4x362xf32, #tpu.memory_space<vmem>>, %arg2: memref<9x8x4xf32, #tpu.memory_space<vmem>>, %arg3: memref<8x8xf32, #tpu.memory_space<vmem>>, %arg4: memref<8x2xf32, #tpu.memory_space<vmem>>, %arg5: memref<1x8x324xf32, #tpu.memory_space<vmem>>) attributes {dimension_semantics = [#tpu.dimension_semantics<parallel>], iteration_bounds = array<i64: 2>, scalar_prefetch = 0 : i64, scratch_operands = 0 : i64, tpu.core_type = #tpu.core_type<tc>, window_params = [{transform_indices = @transform_0, window_bounds = array<i64: 1, 4, 362>}, {pipeline_mode = #tpu.pipeline_mode<synchronous>, transform_indices = @transform_1, window_bounds = array<i64: 9, 8, 4>}, {pipeline_mode = #tpu.pipeline_mode<synchronous>, transform_indices = @transform_2, window_bounds = array<i64: 8, 8>}, {pipeline_mode = #tpu.pipeline_mode<synchronous>, transform_indices = @transform_3, window_bounds = array<i64: 8, 2>}, {transform_indices = @transform_4, window_bounds = array<i64: 1, 8, 324>}]} {
    %c0 = arith.constant 0 : index
    %c0_0 = arith.constant 0 : index
    %c0_1 = arith.constant 0 : index
    %0 = vector.load %arg1[%c0, %c0_0, %c0_1] : memref<1x4x362xf32, #tpu.memory_space<vmem>>, vector<1x4x324xf32>
    %1 = vector.shape_cast %0 : vector<1x4x324xf32> to vector<4x324xf32>
    %c0_2 = arith.constant 0 : index
    %c0_3 = arith.constant 0 : index
    %c0_4 = arith.constant 0 : index
    %2 = vector.load %arg2[%c0_2, %c0_3, %c0_4] : memref<9x8x4xf32, #tpu.memory_space<vmem>>, vector<1x8x4xf32>
    %3 = vector.shape_cast %2 : vector<1x8x4xf32> to vector<8x4xf32>
    %cst = arith.constant dense<0.000000e+00> : vector<8x324xf32>
    %4 = tpu.matmul %3, %1, %cst {dimension_numbers = #tpu.dot_dimension_numbers<[1], [0], [0], [1], [0, 0, 1, 1], [], []>} : vector<8x4xf32>, vector<4x324xf32>, vector<8x324xf32> -> vector<8x324xf32>
    %c0_5 = arith.constant 0 : index
    %c0_6 = arith.constant 0 : index
    %c1 = arith.constant 1 : index
    %5 = vector.load %arg1[%c0_5, %c0_6, %c1] : memref<1x4x362xf32, #tpu.memory_space<vmem>>, vector<1x4x324xf32>
    %6 = vector.shape_cast %5 : vector<1x4x324xf32> to vector<4x324xf32>
    %c1_7 = arith.constant 1 : index
    %c0_8 = arith.constant 0 : index
    %c0_9 = arith.constant 0 : index
    %7 = vector.load %arg2[%c1_7, %c0_8, %c0_9] : memref<9x8x4xf32, #tpu.memory_space<vmem>>, vector<1x8x4xf32>
    %8 = vector.shape_cast %7 : vector<1x8x4xf32> to vector<8x4xf32>
    %cst_10 = arith.constant dense<0.000000e+00> : vector<8x324xf32>
    %9 = tpu.matmul %8, %6, %cst_10 {dimension_numbers = #tpu.dot_dimension_numbers<[1], [0], [0], [1], [0, 0, 1, 1], [], []>} : vector<8x4xf32>, vector<4x324xf32>, vector<8x324xf32> -> vector<8x324xf32>
    %10 = arith.addf %4, %9 : vector<8x324xf32>
    %c0_11 = arith.constant 0 : index
    %c0_12 = arith.constant 0 : index
    %c2 = arith.constant 2 : index
    %11 = vector.load %arg1[%c0_11, %c0_12, %c2] : memref<1x4x362xf32, #tpu.memory_space<vmem>>, vector<1x4x324xf32>
    %12 = vector.shape_cast %11 : vector<1x4x324xf32> to vector<4x324xf32>
    %c2_13 = arith.constant 2 : index
    %c0_14 = arith.constant 0 : index
    %c0_15 = arith.constant 0 : index
    %13 = vector.load %arg2[%c2_13, %c0_14, %c0_15] : memref<9x8x4xf32, #tpu.memory_space<vmem>>, vector<1x8x4xf32>
    %14 = vector.shape_cast %13 : vector<1x8x4xf32> to vector<8x4xf32>
    %cst_16 = arith.constant dense<0.000000e+00> : vector<8x324xf32>
    %15 = tpu.matmul %14, %12, %cst_16 {dimension_numbers = #tpu.dot_dimension_numbers<[1], [0], [0], [1], [0, 0, 1, 1], [], []>} : vector<8x4xf32>, vector<4x324xf32>, vector<8x324xf32> -> vector<8x324xf32>
    %16 = arith.addf %10, %15 : vector<8x324xf32>
    %c0_17 = arith.constant 0 : index
    %c0_18 = arith.constant 0 : index
    %c18 = arith.constant 18 : index
    %17 = vector.load %arg1[%c0_17, %c0_18, %c18] : memref<1x4x362xf32, #tpu.memory_space<vmem>>, vector<1x4x324xf32>
    %18 = vector.shape_cast %17 : vector<1x4x324xf32> to vector<4x324xf32>
    %c3 = arith.constant 3 : index
    %c0_19 = arith.constant 0 : index
    %c0_20 = arith.constant 0 : index
    %19 = vector.load %arg2[%c3, %c0_19, %c0_20] : memref<9x8x4xf32, #tpu.memory_space<vmem>>, vector<1x8x4xf32>
    %20 = vector.shape_cast %19 : vector<1x8x4xf32> to vector<8x4xf32>
    %cst_21 = arith.constant dense<0.000000e+00> : vector<8x324xf32>
    %21 = tpu.matmul %20, %18, %cst_21 {dimension_numbers = #tpu.dot_dimension_numbers<[1], [0], [0], [1], [0, 0, 1, 1], [], []>} : vector<8x4xf32>, vector<4x324xf32>, vector<8x324xf32> -> vector<8x324xf32>
    %22 = arith.addf %16, %21 : vector<8x324xf32>
    %c0_22 = arith.constant 0 : index
    %c0_23 = arith.constant 0 : index
    %c19 = arith.constant 19 : index
    %23 = vector.load %arg1[%c0_22, %c0_23, %c19] : memref<1x4x362xf32, #tpu.memory_space<vmem>>, vector<1x4x324xf32>
    %24 = vector.shape_cast %23 : vector<1x4x324xf32> to vector<4x324xf32>
    %c4 = arith.constant 4 : index
    %c0_24 = arith.constant 0 : index
    %c0_25 = arith.constant 0 : index
    %25 = vector.load %arg2[%c4, %c0_24, %c0_25] : memref<9x8x4xf32, #tpu.memory_space<vmem>>, vector<1x8x4xf32>
    %26 = vector.shape_cast %25 : vector<1x8x4xf32> to vector<8x4xf32>
    %cst_26 = arith.constant dense<0.000000e+00> : vector<8x324xf32>
    %27 = tpu.matmul %26, %24, %cst_26 {dimension_numbers = #tpu.dot_dimension_numbers<[1], [0], [0], [1], [0, 0, 1, 1], [], []>} : vector<8x4xf32>, vector<4x324xf32>, vector<8x324xf32> -> vector<8x324xf32>
    %28 = arith.addf %22, %27 : vector<8x324xf32>
    %c0_27 = arith.constant 0 : index
    %c0_28 = arith.constant 0 : index
    %c20 = arith.constant 20 : index
    %29 = vector.load %arg1[%c0_27, %c0_28, %c20] : memref<1x4x362xf32, #tpu.memory_space<vmem>>, vector<1x4x324xf32>
    %30 = vector.shape_cast %29 : vector<1x4x324xf32> to vector<4x324xf32>
    %c5 = arith.constant 5 : index
    %c0_29 = arith.constant 0 : index
    %c0_30 = arith.constant 0 : index
    %31 = vector.load %arg2[%c5, %c0_29, %c0_30] : memref<9x8x4xf32, #tpu.memory_space<vmem>>, vector<1x8x4xf32>
    %32 = vector.shape_cast %31 : vector<1x8x4xf32> to vector<8x4xf32>
    %cst_31 = arith.constant dense<0.000000e+00> : vector<8x324xf32>
    %33 = tpu.matmul %32, %30, %cst_31 {dimension_numbers = #tpu.dot_dimension_numbers<[1], [0], [0], [1], [0, 0, 1, 1], [], []>} : vector<8x4xf32>, vector<4x324xf32>, vector<8x324xf32> -> vector<8x324xf32>
    %34 = arith.addf %28, %33 : vector<8x324xf32>
    %c0_32 = arith.constant 0 : index
    %c0_33 = arith.constant 0 : index
    %c36 = arith.constant 36 : index
    %35 = vector.load %arg1[%c0_32, %c0_33, %c36] : memref<1x4x362xf32, #tpu.memory_space<vmem>>, vector<1x4x324xf32>
    %36 = vector.shape_cast %35 : vector<1x4x324xf32> to vector<4x324xf32>
    %c6 = arith.constant 6 : index
    %c0_34 = arith.constant 0 : index
    %c0_35 = arith.constant 0 : index
    %37 = vector.load %arg2[%c6, %c0_34, %c0_35] : memref<9x8x4xf32, #tpu.memory_space<vmem>>, vector<1x8x4xf32>
    %38 = vector.shape_cast %37 : vector<1x8x4xf32> to vector<8x4xf32>
    %cst_36 = arith.constant dense<0.000000e+00> : vector<8x324xf32>
    %39 = tpu.matmul %38, %36, %cst_36 {dimension_numbers = #tpu.dot_dimension_numbers<[1], [0], [0], [1], [0, 0, 1, 1], [], []>} : vector<8x4xf32>, vector<4x324xf32>, vector<8x324xf32> -> vector<8x324xf32>
    %40 = arith.addf %34, %39 : vector<8x324xf32>
    %c0_37 = arith.constant 0 : index
    %c0_38 = arith.constant 0 : index
    %c37 = arith.constant 37 : index
    %41 = vector.load %arg1[%c0_37, %c0_38, %c37] : memref<1x4x362xf32, #tpu.memory_space<vmem>>, vector<1x4x324xf32>
    %42 = vector.shape_cast %41 : vector<1x4x324xf32> to vector<4x324xf32>
    %c7 = arith.constant 7 : index
    %c0_39 = arith.constant 0 : index
    %c0_40 = arith.constant 0 : index
    %43 = vector.load %arg2[%c7, %c0_39, %c0_40] : memref<9x8x4xf32, #tpu.memory_space<vmem>>, vector<1x8x4xf32>
    %44 = vector.shape_cast %43 : vector<1x8x4xf32> to vector<8x4xf32>
    %cst_41 = arith.constant dense<0.000000e+00> : vector<8x324xf32>
    %45 = tpu.matmul %44, %42, %cst_41 {dimension_numbers = #tpu.dot_dimension_numbers<[1], [0], [0], [1], [0, 0, 1, 1], [], []>} : vector<8x4xf32>, vector<4x324xf32>, vector<8x324xf32> -> vector<8x324xf32>
    %46 = arith.addf %40, %45 : vector<8x324xf32>
    %c0_42 = arith.constant 0 : index
    %c0_43 = arith.constant 0 : index
    %c38 = arith.constant 38 : index
    %47 = vector.load %arg1[%c0_42, %c0_43, %c38] : memref<1x4x362xf32, #tpu.memory_space<vmem>>, vector<1x4x324xf32>
    %48 = vector.shape_cast %47 : vector<1x4x324xf32> to vector<4x324xf32>
    %c8 = arith.constant 8 : index
    %c0_44 = arith.constant 0 : index
    %c0_45 = arith.constant 0 : index
    %49 = vector.load %arg2[%c8, %c0_44, %c0_45] : memref<9x8x4xf32, #tpu.memory_space<vmem>>, vector<1x8x4xf32>
    %50 = vector.shape_cast %49 : vector<1x8x4xf32> to vector<8x4xf32>
    %cst_46 = arith.constant dense<0.000000e+00> : vector<8x324xf32>
    %51 = tpu.matmul %50, %48, %cst_46 {dimension_numbers = #tpu.dot_dimension_numbers<[1], [0], [0], [1], [0, 0, 1, 1], [], []>} : vector<8x4xf32>, vector<4x324xf32>, vector<8x324xf32> -> vector<8x324xf32>
    %52 = arith.addf %46, %51 : vector<8x324xf32>
    %c0_47 = arith.constant 0 : index
    %c0_48 = arith.constant 0 : index
    %53 = vector.load %arg4[%c0_47, %c0_48] : memref<8x2xf32, #tpu.memory_space<vmem>>, vector<8x1xf32>
    %54 = vector.broadcast %53 : vector<8x1xf32> to vector<8x324xf32>
    %55 = arith.addf %52, %54 : vector<8x324xf32>
    %cst_49 = arith.constant 0.000000e+00 : f32
    %56 = vector.broadcast %cst_49 : f32 to vector<8x324xf32>
    %57 = arith.maximumf %55, %56 : vector<8x324xf32>
    %c0_50 = arith.constant 0 : index
    %c0_51 = arith.constant 0 : index
    %58 = vector.load %arg3[%c0_50, %c0_51] : memref<8x8xf32, #tpu.memory_space<vmem>>, vector<8x8xf32>
    %cst_52 = arith.constant dense<0.000000e+00> : vector<8x324xf32>
    %59 = tpu.matmul %58, %57, %cst_52 {dimension_numbers = #tpu.dot_dimension_numbers<[1], [0], [0], [1], [0, 0, 1, 1], [], []>} : vector<8x8xf32>, vector<8x324xf32>, vector<8x324xf32> -> vector<8x324xf32>
    %c0_53 = arith.constant 0 : index
    %c1_54 = arith.constant 1 : index
    %60 = vector.load %arg4[%c0_53, %c1_54] : memref<8x2xf32, #tpu.memory_space<vmem>>, vector<8x1xf32>
    %61 = vector.broadcast %60 : vector<8x1xf32> to vector<8x324xf32>
    %62 = arith.addf %59, %61 : vector<8x324xf32>
    %cst_55 = arith.constant 0.000000e+00 : f32
    %63 = vector.broadcast %cst_55 : f32 to vector<8x324xf32>
    %64 = arith.maximumf %62, %63 : vector<8x324xf32>
    %c0_56 = arith.constant 0 : index
    %c0_57 = arith.constant 0 : index
    %c0_58 = arith.constant 0 : index
    %65 = vector.load %arg5[%c0_56, %c0_57, %c0_58] : memref<1x8x324xf32, #tpu.memory_space<vmem>>, vector<1x8x324xf32>
    %66 = vector.shape_cast %65 : vector<1x8x324xf32> to vector<8x324xf32>
    %67 = vector.shape_cast %64 : vector<8x324xf32> to vector<1x8x324xf32>
    tpu.vector_store %arg5[%c0_56, %c0_57, %c0_58], %67 {strides = array<i32>} : memref<1x8x324xf32, #tpu.memory_space<vmem>>, vector<1x8x324xf32>,
    return
  }
  func.func @transform_0(%arg0: i32) -> (i32, i32, i32) {
    %c0_i32 = arith.constant 0 : i32
    %c0_i32_0 = arith.constant 0 : i32
    %c0_i32_1 = arith.constant 0 : i32
    return %arg0, %c0_i32, %c0_i32_0 : i32, i32, i32
  }
  func.func @transform_1(%arg0: i32) -> (i32, i32, i32) {
    %c0_i32 = arith.constant 0 : i32
    %c0_i32_0 = arith.constant 0 : i32
    %c0_i32_1 = arith.constant 0 : i32
    %c0_i32_2 = arith.constant 0 : i32
    return %c0_i32, %c0_i32_0, %c0_i32_1 : i32, i32, i32
  }
  func.func @transform_2(%arg0: i32) -> (i32, i32) {
    %c0_i32 = arith.constant 0 : i32
    %c0_i32_0 = arith.constant 0 : i32
    %c0_i32_1 = arith.constant 0 : i32
    return %c0_i32, %c0_i32_0 : i32, i32
  }
  func.func @transform_3(%arg0: i32) -> (i32, i32) {
    %c0_i32 = arith.constant 0 : i32
    %c0_i32_0 = arith.constant 0 : i32
    %c0_i32_1 = arith.constant 0 : i32
    return %c0_i32, %c0_i32_0 : i32, i32
  }
  func.func @transform_4(%arg0: i32) -> (i32, i32, i32) {
    %c0_i32 = arith.constant 0 : i32
    %c0_i32_0 = arith.constant 0 : i32
    %c0_i32_1 = arith.constant 0 : i32
    return %arg0, %c0_i32, %c0_i32_0 : i32, i32, i32
  }
}

</mosaic_0001>

<llo_original>
// kernel: dwconv_block.1
$region0: #{dwconv_block.1}
  #allocation0 [shape = 'u32[]', space=smem, size = 0x4, offset = 0x4, fixed_abs, tag = 'smem constant byte address 0x4 - core index']
  #allocation1 [shape = 'u32[144,128]{1,0:T(1,128)}', space=vmem, size = 0x12000, scoped, tag = 'internal scratch']
  %s0 = inlined_call_operand.vmem [shape: f32[2,4,362], index: 0, kind: input, shape index: {}]
  %s1 = inlined_call_operand.vmem [shape: f32[9,8,4], index: 1, kind: input, shape index: {}]
  %s2 = inlined_call_operand.vmem [shape: f32[8,8], index: 2, kind: input, shape index: {}]
  %s3 = inlined_call_operand.vmem [shape: f32[8,2], index: 3, kind: input, shape index: {}]
  %s4 = inlined_call_operand.vmem [shape: f32[2,8,324], index: 4, kind: output, shape index: {}]
  %s5 = sld [smem:[#allocation0]]
  $region49: #{dwconv_block.1} parent=0
    _
  %s7 = ssub.s32 1, %s5
  %s8 = scalar_select 0, %s7, %s5
  loop: start=0, step=1, limit=4
  $region2: #{dwconv_block.1} parent=0 // loop_pre_header
    _
  $region3: #{dwconv_block.1} parent=0 // loop_header
    %s10 = sphi 0, %s14
    %p11 = scmp.ge.s32.totalorder %s10, 4
    %s20 = sphi 0, %s22
    %s23 = sphi 0, %s20
    %s24 = sphi 0, %s23
    %s40 = sphi 0, %s24
    %s44 = sphi 0, %s44
    %s46 = sphi 0, %s44
    %s47 = sphi 0, %s46
    %s61 = sphi 0, %s47
    %s65 = sphi 0, %s65
    %s67 = sphi 0, %s65
    %s68 = sphi 0, %s67
    %s82 = sphi 0, %s68
    %s86 = sphi 0, %s86
    %s88 = sphi 0, %s86
    %s89 = sphi 0, %s88
    %s103 = sphi 0, %s89
    %s109 = sphi 0, %s111
    %s112 = sphi 0, %s109
    %s113 = sphi 0, %s112
    %s129 = sphi 0, %s113
  $region4: #{dwconv_block.1} parent=0 // loop_header_branch
    %13 = sbr.rel (%p11) target = $region8
  $region5: #{dwconv_block.1} parent=0 // loop_body
    %s15 = ssub.s32 %s10, 1
    %s16 = ssub.s32 %s10, 2
    %s17 = sadd.s32 %s10, 1
    %s18 = ssub.s32 %s10, %s17
    %p19 = scmp.eq.s32.totalorder %s18, 0
    %s21 = sadd.s32 %s20, 1
    %s22 = scalar_select %p19, %s20, %s21
    %p25 = pneg %p19
    %p26 = scmp.eq.s32.totalorder %s10, 1
    %p27 = por %p25, %p26
    %p28 = scmp.ne.s32.totalorder %s20, %s23
    %p29 = scmp.eq.s32.totalorder %s10, 0
    %p30 = por %p28, %p29
    %p31 = scmp.ne.s32.totalorder %s20, %s23
    %p32 = scmp.eq.s32.totalorder %s15, 1
    %p33 = por %p31, %p32
    %p34 = scmp.ne.s32.totalorder %s23, %s24
    %p35 = scmp.eq.s32.totalorder %s15, 0
    %p36 = por %p34, %p35
    %p37 = scmp.ne.s32.totalorder %s23, %s24
    %p38 = scmp.eq.s32.totalorder %s16, 1
    %p39 = por %p37, %p38
    %p41 = scmp.ne.s32.totalorder %s24, %s40
    %p42 = scmp.eq.s32.totalorder %s16, 0
    %p43 = por %p41, %p42
    %s45 = sadd.s32 %s44, 1
    %p48 = scmp.eq.s32.totalorder %s10, 1
    %p49 = scmp.ne.s32.totalorder %s44, %s46
    %p50 = scmp.eq.s32.totalorder %s10, 0
    %p51 = por %p49, %p50
    %p52 = scmp.ne.s32.totalorder %s44, %s46
    %p53 = scmp.eq.s32.totalorder %s15, 1
    %p54 = por %p52, %p53
    %p55 = scmp.ne.s32.totalorder %s46, %s47
    %p56 = scmp.eq.s32.totalorder %s15, 0
    %p57 = por %p55, %p56
    %p58 = scmp.ne.s32.totalorder %s46, %s47
    %p59 = scmp.eq.s32.totalorder %s16, 1
    %p60 = por %p58, %p59
    %p62 = scmp.ne.s32.totalorder %s47, %s61
    %p63 = scmp.eq.s32.totalorder %s16, 0
    %p64 = por %p62, %p63
    %s66 = sadd.s32 %s65, 1
    %p69 = scmp.eq.s32.totalorder %s10, 1
    %p70 = scmp.ne.s32.totalorder %s65, %s67
    %p71 = scmp.eq.s32.totalorder %s10, 0
    %p72 = por %p70, %p71
    %p73 = scmp.ne.s32.totalorder %s65, %s67
    %p74 = scmp.eq.s32.totalorder %s15, 1
    %p75 = por %p73, %p74
    %p76 = scmp.ne.s32.totalorder %s67, %s68
    %p77 = scmp.eq.s32.totalorder %s15, 0
    %p78 = por %p76, %p77
    %p79 = scmp.ne.s32.totalorder %s67, %s68
    %p80 = scmp.eq.s32.totalorder %s16, 1
    %p81 = por %p79, %p80
    %p83 = scmp.ne.s32.totalorder %s68, %s82
    %p84 = scmp.eq.s32.totalorder %s16, 0
    %p85 = por %p83, %p84
    %s87 = sadd.s32 %s86, 1
    %p90 = scmp.eq.s32.totalorder %s10, 1
    %p91 = scmp.ne.s32.totalorder %s86, %s88
    %p92 = scmp.eq.s32.totalorder %s10, 0
    %p93 = por %p91, %p92
    %p94 = scmp.ne.s32.totalorder %s86, %s88
    %p95 = scmp.eq.s32.totalorder %s15, 1
    %p96 = por %p94, %p95
    %p97 = scmp.ne.s32.totalorder %s88, %s89
    %p98 = scmp.eq.s32.totalorder %s15, 0
    %p99 = por %p97, %p98
    %p100 = scmp.ne.s32.totalorder %s88, %s89
    %p101 = scmp.eq.s32.totalorder %s16, 1
    %p102 = por %p100, %p101
    %p104 = scmp.ne.s32.totalorder %s89, %s103
    %p105 = scmp.eq.s32.totalorder %s16, 0
    %p106 = por %p104, %p105
    %s107 = ssub.s32 %s10, %s17
    %p108 = scmp.eq.s32.totalorder %s107, 0
    %s110 = sadd.s32 %s109, 1
    %s111 = scalar_select %p108, %s109, %s110
    %p114 = pneg %p108
    %p115 = scmp.eq.s32.totalorder %s10, 1
    %p116 = por %p114, %p115
    %p117 = scmp.ne.s32.totalorder %s109, %s112
    %p118 = scmp.eq.s32.totalorder %s10, 0
    %p119 = por %p117, %p118
    %p120 = scmp.ne.s32.totalorder %s109, %s112
    %p121 = scmp.eq.s32.totalorder %s15, 1
    %p122 = por %p120, %p121
    %p123 = scmp.ne.s32.totalorder %s112, %s113
    %p124 = scmp.eq.s32.totalorder %s15, 0
    %p125 = por %p123, %p124
    %p126 = scmp.ne.s32.totalorder %s112, %s113
    %p127 = scmp.eq.s32.totalorder %s16, 1
    %p128 = por %p126, %p127
    %p130 = scmp.ne.s32.totalorder %s113, %s129
    %p131 = scmp.eq.s32.totalorder %s16, 0
    %p132 = por %p130, %p131
    %p133 = scmp.le.s32.totalorder 1, %s10
    %p134 = scmp.lt.s32.totalorder %s10, 3
    %p135 = pnand %p133, %p134
    %p136 = pneg %p135
    // Predicated region
    $region9: #{dwconv_block.1} parent=5 // pred_check
      _
    $region10: #{dwconv_block.1} parent=5 // pred_check_branch
      %138 = sbr.rel (%p135) target = $region12
    $region11: #{dwconv_block.1} parent=5 // pred_region
      %s139 = ssub.s32 %s10, 1
      // Predicated region
      $region13: #{dwconv_block.1} parent=11 // pred_check
        %p140 = pneg %p57
      $region14: #{dwconv_block.1} parent=11 // pred_check_branch
        %142 = sbr.rel (%p140) target = $region16
      $region15: #{dwconv_block.1} parent=11 // pred_region
        _
      $region16: #{dwconv_block.1} parent=11 // pred_fallthru
        _
      // Predicated region
      $region17: #{dwconv_block.1} parent=11 // pred_check
        %p143 = pneg %p78
      $region18: #{dwconv_block.1} parent=11 // pred_check_branch
        %145 = sbr.rel (%p143) target = $region20
      $region19: #{dwconv_block.1} parent=11 // pred_region
        _
      $region20: #{dwconv_block.1} parent=11 // pred_fallthru
        _
      // Predicated region
      $region21: #{dwconv_block.1} parent=11 // pred_check
        %p146 = pneg %p99
      $region22: #{dwconv_block.1} parent=11 // pred_check_branch
        %148 = sbr.rel (%p146) target = $region24
      $region23: #{dwconv_block.1} parent=11 // pred_region
        _
      $region24: #{dwconv_block.1} parent=11 // pred_fallthru
        _
    $region12: #{dwconv_block.1} parent=5 // pred_fallthru
      _
    %p149 = scmp.lt.s32.totalorder %s10, 2
    // Predicated region
    $region25: #{dwconv_block.1} parent=5 // pred_check
      %p150 = pneg %p149
    $region26: #{dwconv_block.1} parent=5 // pred_check_branch
      %152 = sbr.rel (%p150) target = $region28
    $region27: #{dwconv_block.1} parent=5 // pred_region
      // Predicated region
      $region29: #{dwconv_block.1} parent=27 // pred_check
        %p153 = pneg %p30
      $region30: #{dwconv_block.1} parent=27 // pred_check_branch
        %155 = sbr.rel (%p153) target = $region32
      $region31: #{dwconv_block.1} parent=27 // pred_region
        %p156 = scmp.lt.s32.totalorder %s10, 1
        %s157 = scalar_select %p156, %s10, 1
        %s158 = smul.addr %s157, 3
        %s159 = smul.addr %s158, 4
        %s160 = scalar_lea.vmem %s0, %s159
      $region32: #{dwconv_block.1} parent=27 // pred_fallthru
        _
    $region28: #{dwconv_block.1} parent=5 // pred_fallthru
      _
    %p161 = scmp.le.s32.totalorder 1, %s10
    %p162 = scmp.lt.s32.totalorder %s10, 3
    %p163 = pnand %p161, %p162
    %p164 = pneg %p163
    // Predicated region
    $region33: #{dwconv_block.1} parent=5 // pred_check
      _
    $region34: #{dwconv_block.1} parent=5 // pred_check_branch
      %166 = sbr.rel (%p163) target = $region36
    $region35: #{dwconv_block.1} parent=5 // pred_region
      %s167 = ssub.s32 %s10, 1
      %p168 = scmp.lt.s32.totalorder %s15, 1
      %s169 = scalar_select %p168, %s15, 1
      %s170 = smul.addr %s169, 3
      %s171 = smul.addr %s170, 4
      %s172 = scalar_lea.vmem %s0, %s171
      %p173 = pneg %p36
      %p174 = pneg %p33
      %p175 = pneg %p57
      %p176 = pneg %p54
      %p177 = pneg %p78
      %p178 = pneg %p75
      %p179 = pneg %p99
      %p180 = pneg %p96
      %p181 = pneg %p125
      %p182 = pneg %p122
      %p183 = scmp.lt.s32.totalorder %s15, 1
      %s184 = scalar_select %p183, %s15, 1
      %s185 = smul.addr %s184, 3
      %s186 = smul.addr %s185, 8
      %s187 = scalar_lea.vmem %s4, %s186
      %p188 = scmp.lt.s32.totalorder %s15, 1
      %s189 = scalar_select %p188, %s15, 1
      %s190 = smul.addr %s189, 3
      %s191 = smul.addr %s190, 4
      %s192 = scalar_lea.vmem %s0, %s191
      %p193 = scmp.lt.s32.totalorder %s15, 1
      %s194 = scalar_select %p193, %s15, 1
      %s195 = smul.addr %s194, 3
      %s196 = smul.addr %s195, 8
      %s197 = scalar_lea.vmem %s4, %s196
      %v198 = vld [vmem:[%s192] sm:$0xff]
      %v199 = vld [vmem:[%s192 + $0x8] sm:$0xf]
      %v200 = vld [vmem:[%s1] sm:$0xff]
      %s201 = scalar_lea.vmem %s1, 8
      %v202 = vld [vmem:[%s201] sm:$0xff]
      %v205 = vcombine.high %v198, %v198
      %206 = vrot.lane.b32.xlu0 %v198, 127
      %v207 = vpop.permute.xlu0 %206
      %208 = vrot.lane.b32.xlu0 %v205, 127
      %v209 = vpop.permute.xlu0 %208
      %210 = vrot.lane.b32.xlu0 %v199, 127
      %v211 = vpop.permute.xlu0 %210
      %vm212 = vcmask 1039360
      %v213 = vsel %vm212, %v207, %v209
      %v214 = vsel %vm212, %v209, %v211
      %vm215 = vcmask 31744
      %v217 = vsel %vm215, %v202, 0
      %vm219 = vcmask 1043456
      %v220 = vsel %vm219, %v213, 0
      %v222 = vsel %vm219, %v214, 0
      %v224 = vsel %vm219, %v211, 0
      %226 = vmatprep.subr.mxu0 %v222
      %227 = vmatpush1.msra.mxu0 %v220
      %228 = vmatprep.subr.mxu0 0.0
      %229 = vmatpush1.msra.mxu0 0.0
      %230 = vmatprep.subr.mxu0 0.0
      %231 = vmatpush1.msra.mxu0 0.0
      %232 = vmatprep.subr.mxu0 0.0
      %233 = vmatpush1.msra.mxu0 0.0
      %234 = vmatprep.subr.mxu0 0.0
      %235 = vmatpush1.msra.mxu0 0.0
      %236 = vmatprep.subr.mxu0 0.0
      %237 = vmatpush1.msra.mxu0 0.0
      %238 = vmatprep.subr.mxu0 0.0
      %239 = vmatpush1.msra.mxu0 0.0
      %240 = vmatprep.subr.mxu0 0.0
      %241 = vmatpush1.msra.mxu0 0.0
      %242 = vmatprep.subr.mxu0 0.0
      %243 = vmatpush1.msra.mxu0 0.0
      %244 = vmatprep.subr.mxu0 0.0
      %245 = vmatpush1.msra.mxu0 0.0
      %246 = vmatprep.subr.mxu0 0.0
      %247 = vmatpush1.msra.mxu0 0.0
      %248 = vmatprep.subr.mxu0 0.0
      %249 = vmatpush1.msra.mxu0 0.0
      %250 = vmatprep.subr.mxu0 0.0
      %251 = vmatpush1.msra.mxu0 0.0
      %252 = vmatprep.subr.mxu0 0.0
      %253 = vmatpush1.msra.mxu0 0.0
      %254 = vmatprep.subr.mxu0 0.0
      %255 = vmatpush1.msra.mxu0 0.0
      %256 = vmatprep.subr.mxu0 0.0
      %257 = vmatpush1.msra.mxu0 0.0
      %258 = vmatprep.subr.mxu0 0.0
      %259 = vmatpush1.msra.mxu0 0.0
      %260 = vmatprep.subr.mxu0 0.0
      %261 = vmatpush1.msra.mxu0 0.0
      %262 = vmatprep.subr.mxu0 0.0
      %263 = vmatpush1.msra.mxu0 0.0
      %264 = vmatprep.subr.mxu0 0.0
      %265 = vmatpush1.msra.mxu0 0.0
      %266 = vmatprep.subr.mxu0 0.0
      %267 = vmatpush1.msra.mxu0 0.0
      %268 = vmatprep.subr.mxu0 0.0
      %269 = vmatpush1.msra.mxu0 0.0
      %270 = vmatprep.subr.mxu0 0.0
      %271 = vmatpush1.msra.mxu0 0.0
      %272 = vmatprep.subr.mxu0 0.0
      %273 = vmatpush1.msra.mxu0 0.0
      %274 = vmatprep.subr.mxu0 0.0
      %275 = vmatpush1.msra.mxu0 0.0
      %276 = vmatprep.subr.mxu0 0.0
      %277 = vmatpush1.msra.mxu0 0.0
      %278 = vmatprep.subr.mxu0 0.0
      %279 = vmatpush1.msra.mxu0 0.0
      %280 = vmatprep.subr.mxu0 0.0
      %281 = vmatpush1.msra.mxu0 0.0
      %282 = vmatprep.subr.mxu0 0.0
      %283 = vmatpush1.msra.mxu0 0.0
      %284 = vmatprep.subr.mxu0 0.0
      %285 = vmatpush1.msra.mxu0 0.0
      %286 = vmatprep.subr.mxu0 0.0
      %287 = vmatpush1.msra.mxu0 0.0
      %288 = vmatprep.subr.mxu0 0.0
      %289 = vmatpush1.msra.mxu0 0.0
      %290 = vmatprep.mubr.f32.mxu0 0.0
      %291 = vmatmul.mubr.f32.gmra.mrb[0].mxu0 %v217
      %v292 = vpop.f32.mrb[0].mxu0
      %v293 = vadd.f32 0.0, %v292
      %v294 = vpop.f32.mrb[0].mxu0
      %v295 = vadd.f32 0.0, %v294
      %296 = vdwg.mxu0
      %297 = vmatprep.subr.mxu0 0.0
      %298 = vmatpush1.msra.mxu0 %v224
      %299 = vmatprep.subr.mxu0 0.0
      %300 = vmatpush1.msra.mxu0 0.0
      %301 = vmatprep.subr.mxu0 0.0
      %302 = vmatpush1.msra.mxu0 0.0
      %303 = vmatprep.subr.mxu0 0.0
      %304 = vmatpush1.msra.mxu0 0.0
      %305 = vmatprep.subr.mxu0 0.0
      %306 = vmatpush1.msra.mxu0 0.0
      %307 = vmatprep.subr.mxu0 0.0
      %308 = vmatpush1.msra.mxu0 0.0
      %309 = vmatprep.subr.mxu0 0.0
      %310 = vmatpush1.msra.mxu0 0.0
      %311 = vmatprep.subr.mxu0 0.0
      %312 = vmatpush1.msra.mxu0 0.0
      %313 = vmatprep.subr.mxu0 0.0
      %314 = vmatpush1.msra.mxu0 0.0
      %315 = vmatprep.subr.mxu0 0.0
      %316 = vmatpush1.msra.mxu0 0.0
      %317 = vmatprep.subr.mxu0 0.0
      %318 = vmatpush1.msra.mxu0 0.0
      %319 = vmatprep.subr.mxu0 0.0
      %320 = vmatpush1.msra.mxu0 0.0
      %321 = vmatprep.subr.mxu0 0.0
      %322 = vmatpush1.msra.mxu0 0.0
      %323 = vmatprep.subr.mxu0 0.0
      %324 = vmatpush1.msra.mxu0 0.0
      %325 = vmatprep.subr.mxu0 0.0
      %326 = vmatpush1.msra.mxu0 0.0
      %327 = vmatprep.subr.mxu0 0.0
      %328 = vmatpush1.msra.mxu0 0.0
      %329 = vmatprep.subr.mxu0 0.0
      %330 = vmatpush1.msra.mxu0 0.0
      %331 = vmatprep.subr.mxu0 0.0
      %332 = vmatpush1.msra.mxu0 0.0
      %333 = vmatprep.subr.mxu0 0.0
      %334 = vmatpush1.msra.mxu0 0.0
      %335 = vmatprep.subr.mxu0 0.0
      %336 = vmatpush1.msra.mxu0 0.0
      %337 = vmatprep.subr.mxu0 0.0
      %338 = vmatpush1.msra.mxu0 0.0
      %339 = vmatprep.subr.mxu0 0.0
      %340 = vmatpush1.msra.mxu0 0.0
      %341 = vmatprep.subr.mxu0 0.0
      %342 = vmatpush1.msra.mxu0 0.0
      %343 = vmatprep.subr.mxu0 0.0
      %344 = vmatpush1.msra.mxu0 0.0
      %345 = vmatprep.subr.mxu0 0.0
      %346 = vmatpush1.msra.mxu0 0.0
      %347 = vmatprep.subr.mxu0 0.0
      %348 = vmatpush1.msra.mxu0 0.0
      %349 = vmatprep.subr.mxu0 0.0
      %350 = vmatpush1.msra.mxu0 0.0
      %351 = vmatprep.subr.mxu0 0.0
      %352 = vmatpush1.msra.mxu0 0.0
      %353 = vmatprep.subr.mxu0 0.0
      %354 = vmatpush1.msra.mxu0 0.0
      %355 = vmatprep.subr.mxu0 0.0
      %356 = vmatpush1.msra.mxu0 0.0
      %357 = vmatprep.subr.mxu0 0.0
      %358 = vmatpush1.msra.mxu0 0.0
      %359 = vmatprep.subr.mxu0 0.0
      %360 = vmatpush1.msra.mxu0 0.0
      %361 = vmatprep.mubr.f32.mxu0 0.0
      %362 = vmatmul.mubr.f32.gmra.mrb[0].mxu0 %v217
      %v363 = vpop.f32.mrb[0].mxu0
      %v364 = vadd.f32 0.0, %v363
      %v365 = vpop.f32.mrb[0].mxu0
      %366 = vdwg.mxu0
      %v368 = vsel %vm215, %v200, 0
      %v370 = vsel %vm219, %v198, 0
      %v372 = vsel %vm219, %v205, 0
      %v374 = vsel %vm219, %v199, 0
      %376 = vmatprep.subr.mxu0 %v372
      %377 = vmatpush1.msra.mxu0 %v370
      %378 = vmatprep.subr.mxu0 0.0
      %379 = vmatpush1.msra.mxu0 0.0
      %380 = vmatprep.subr.mxu0 0.0
      %381 = vmatpush1.msra.mxu0 0.0
      %382 = vmatprep.subr.mxu0 0.0
      %383 = vmatpush1.msra.mxu0 0.0
      %384 = vmatprep.subr.mxu0 0.0
      %385 = vmatpush1.msra.mxu0 0.0
      %386 = vmatprep.subr.mxu0 0.0
      %387 = vmatpush1.msra.mxu0 0.0
      %388 = vmatprep.subr.mxu0 0.0
      %389 = vmatpush1.msra.mxu0 0.0
      %390 = vmatprep.subr.mxu0 0.0
      %391 = vmatpush1.msra.mxu0 0.0
      %392 = vmatprep.subr.mxu0 0.0
      %393 = vmatpush1.msra.mxu0 0.0
      %394 = vmatprep.subr.mxu0 0.0
      %395 = vmatpush1.msra.mxu0 0.0
      %396 = vmatprep.subr.mxu0 0.0
      %397 = vmatpush1.msra.mxu0 0.0
      %398 = vmatprep.subr.mxu0 0.0
      %399 = vmatpush1.msra.mxu0 0.0
      %400 = vmatprep.subr.mxu0 0.0
      %401 = vmatpush1.msra.mxu0 0.0
      %402 = vmatprep.subr.mxu0 0.0
      %403 = vmatpush1.msra.mxu0 0.0
      %404 = vmatprep.subr.mxu0 0.0
      %405 = vmatpush1.msra.mxu0 0.0
      %406 = vmatprep.subr.mxu0 0.0
      %407 = vmatpush1.msra.mxu0 0.0
      %408 = vmatprep.subr.mxu0 0.0
      %409 = vmatpush1.msra.mxu0 0.0
      %410 = vmatprep.subr.mxu0 0.0
      %411 = vmatpush1.msra.mxu0 0.0
      %412 = vmatprep.subr.mxu0 0.0
      %413 = vmatpush1.msra.mxu0 0.0
      %414 = vmatprep.subr.mxu0 0.0
      %415 = vmatpush1.msra.mxu0 0.0
      %416 = vmatprep.subr.mxu0 0.0
      %417 = vmatpush1.msra.mxu0 0.0
      %418 = vmatprep.subr.mxu0 0.0
      %419 = vmatpush1.msra.mxu0 0.0
      %420 = vmatprep.subr.mxu0 0.0
      %421 = vmatpush1.msra.mxu0 0.0
      %422 = vmatprep.subr.mxu0 0.0
      %423 = vmatpush1.msra.mxu0 0.0
      %424 = vmatprep.subr.mxu0 0.0
      %425 = vmatpush1.msra.mxu0 0.0
      %426 = vmatprep.subr.mxu0 0.0
      %427 = vmatpush1.msra.mxu0 0.0
      %428 = vmatprep.subr.mxu0 0.0
      %429 = vmatpush1.msra.mxu0 0.0
      %430 = vmatprep.subr.mxu0 0.0
      %431 = vmatpush1.msra.mxu0 0.0
      %432 = vmatprep.subr.mxu0 0.0
      %433 = vmatpush1.msra.mxu0 0.0
      %434 = vmatprep.subr.mxu0 0.0
      %435 = vmatpush1.msra.mxu0 0.0
      %436 = vmatprep.subr.mxu0 0.0
      %437 = vmatpush1.msra.mxu0 0.0
      %438 = vmatprep.subr.mxu0 0.0
      %439 = vmatpush1.msra.mxu0 0.0
      %440 = vmatprep.mubr.f32.mxu0 0.0
      %441 = vmatmul.mubr.f32.gmra.mrb[0].mxu0 %v368
      %v442 = vpop.f32.mrb[0].mxu0
      %v443 = vadd.f32 %v293, %v442
      %v444 = vpop.f32.mrb[0].mxu0
      %v445 = vadd.f32 %v295, %v444
      %446 = vdwg.mxu0
      %447 = vmatprep.subr.mxu0 0.0
      %448 = vmatpush1.msra.mxu0 %v374
      %449 = vmatprep.subr.mxu0 0.0
      %450 = vmatpush1.msra.mxu0 0.0
      %451 = vmatprep.subr.mxu0 0.0
      %452 = vmatpush1.msra.mxu0 0.0
      %453 = vmatprep.subr.mxu0 0.0
      %454 = vmatpush1.msra.mxu0 0.0
      %455 = vmatprep.subr.mxu0 0.0
      %456 = vmatpush1.msra.mxu0 0.0
      %457 = vmatprep.subr.mxu0 0.0
      %458 = vmatpush1.msra.mxu0 0.0
      %459 = vmatprep.subr.mxu0 0.0
      %460 = vmatpush1.msra.mxu0 0.0
      %461 = vmatprep.subr.mxu0 0.0
      %462 = vmatpush1.msra.mxu0 0.0
      %463 = vmatprep.subr.mxu0 0.0
      %464 = vmatpush1.msra.mxu0 0.0
      %465 = vmatprep.subr.mxu0 0.0
      %466 = vmatpush1.msra.mxu0 0.0
      %467 = vmatprep.subr.mxu0 0.0
      %468 = vmatpush1.msra.mxu0 0.0
      %469 = vmatprep.subr.mxu0 0.0
      %470 = vmatpush1.msra.mxu0 0.0
      %471 = vmatprep.subr.mxu0 0.0
      %472 = vmatpush1.msra.mxu0 0.0
      %473 = vmatprep.subr.mxu0 0.0
      %474 = vmatpush1.msra.mxu0 0.0
      %475 = vmatprep.subr.mxu0 0.0
      %476 = vmatpush1.msra.mxu0 0.0
      %477 = vmatprep.subr.mxu0 0.0
      %478 = vmatpush1.msra.mxu0 0.0
      %479 = vmatprep.subr.mxu0 0.0
      %480 = vmatpush1.msra.mxu0 0.0
      %481 = vmatprep.subr.mxu0 0.0
      %482 = vmatpush1.msra.mxu0 0.0
      %483 = vmatprep.subr.mxu0 0.0
      %484 = vmatpush1.msra.mxu0 0.0
      %485 = vmatprep.subr.mxu0 0.0
      %486 = vmatpush1.msra.mxu0 0.0
      %487 = vmatprep.subr.mxu0 0.0
      %488 = vmatpush1.msra.mxu0 0.0
      %489 = vmatprep.subr.mxu0 0.0
      %490 = vmatpush1.msra.mxu0 0.0
      %491 = vmatprep.subr.mxu0 0.0
      %492 = vmatpush1.msra.mxu0 0.0
      %493 = vmatprep.subr.mxu0 0.0
      %494 = vmatpush1.msra.mxu0 0.0
      %495 = vmatprep.subr.mxu0 0.0
      %496 = vmatpush1.msra.mxu0 0.0
      %497 = vmatprep.subr.mxu0 0.0
      %498 = vmatpush1.msra.mxu0 0.0
      %499 = vmatprep.subr.mxu0 0.0
      %500 = vmatpush1.msra.mxu0 0.0
      %501 = vmatprep.subr.mxu0 0.0
      %502 = vmatpush1.msra.mxu0 0.0
      %503 = vmatprep.subr.mxu0 0.0
      %504 = vmatpush1.msra.mxu0 0.0
      %505 = vmatprep.subr.mxu0 0.0
      %506 = vmatpush1.msra.mxu0 0.0
      %507 = vmatprep.subr.mxu0 0.0
      %508 = vmatpush1.msra.mxu0 0.0
      %509 = vmatprep.subr.mxu0 0.0
      %510 = vmatpush1.msra.mxu0 0.0
      %511 = vmatprep.mubr.f32.mxu0 0.0
      %512 = vmatmul.mubr.f32.gmra.mrb[0].mxu0 %v368
      %v513 = vpop.f32.mrb[0].mxu0
      %v514 = vadd.f32 %v364, %v513
      %v515 = vpop.f32.mrb[0].mxu0
      %516 = vdwg.mxu0
      %v517 = vld [vmem:[%s192] sm:$0xff]
      %v518 = vld [vmem:[%s192 + $0x8] sm:$0xf]
      %s519 = scalar_lea.vmem %s1, 16
      %v520 = vld [vmem:[%s519] sm:$0xff]
      %v523 = vcombine.high %v517, %v517
      %524 = vrot.lane.b32.xlu0 %v517, 126
      %v525 = vpop.permute.xlu0 %524
      %526 = vrot.lane.b32.xlu0 %v523, 126
      %v527 = vpop.permute.xlu0 %526
      %528 = vrot.lane.b32.xlu0 %v518, 126
      %v529 = vpop.permute.xlu0 %528
      %vm530 = vcmask 1031168
      %v531 = vsel %vm530, %v525, %v527
      %v532 = vsel %vm530, %v527, %v529
      %v534 = vsel %vm215, %v520, 0
      %v536 = vsel %vm219, %v531, 0
      %v538 = vsel %vm219, %v532, 0
      %v540 = vsel %vm219, %v529, 0
      %542 = vmatprep.subr.mxu0 %v538
      %543 = vmatpush1.msra.mxu0 %v536
      %544 = vmatprep.subr.mxu0 0.0
      %545 = vmatpush1.msra.mxu0 0.0
      %546 = vmatprep.subr.mxu0 0.0
      %547 = vmatpush1.msra.mxu0 0.0
      %548 = vmatprep.subr.mxu0 0.0
      %549 = vmatpush1.msra.mxu0 0.0
      %550 = vmatprep.subr.mxu0 0.0
      %551 = vmatpush1.msra.mxu0 0.0
      %552 = vmatprep.subr.mxu0 0.0
      %553 = vmatpush1.msra.mxu0 0.0
      %554 = vmatprep.subr.mxu0 0.0
      %555 = vmatpush1.msra.mxu0 0.0
      %556 = vmatprep.subr.mxu0 0.0
      %557 = vmatpush1.msra.mxu0 0.0
      %558 = vmatprep.subr.mxu0 0.0
      %559 = vmatpush1.msra.mxu0 0.0
      %560 = vmatprep.subr.mxu0 0.0
      %561 = vmatpush1.msra.mxu0 0.0
      %562 = vmatprep.subr.mxu0 0.0
      %563 = vmatpush1.msra.mxu0 0.0
      %564 = vmatprep.subr.mxu0 0.0
      %565 = vmatpush1.msra.mxu0 0.0
      %566 = vmatprep.subr.mxu0 0.0
      %567 = vmatpush1.msra.mxu0 0.0
      %568 = vmatprep.subr.mxu0 0.0
      %569 = vmatpush1.msra.mxu0 0.0
      %570 = vmatprep.subr.mxu0 0.0
      %571 = vmatpush1.msra.mxu0 0.0
      %572 = vmatprep.subr.mxu0 0.0
      %573 = vmatpush1.msra.mxu0 0.0
      %574 = vmatprep.subr.mxu0 0.0
      %575 = vmatpush1.msra.mxu0 0.0
      %576 = vmatprep.subr.mxu0 0.0
      %577 = vmatpush1.msra.mxu0 0.0
      %578 = vmatprep.subr.mxu0 0.0
      %579 = vmatpush1.msra.mxu0 0.0
      %580 = vmatprep.subr.mxu0 0.0
      %581 = vmatpush1.msra.mxu0 0.0
      %582 = vmatprep.subr.mxu0 0.0
      %583 = vmatpush1.msra.mxu0 0.0
      %584 = vmatprep.subr.mxu0 0.0
      %585 = vmatpush1.msra.mxu0 0.0
      %586 = vmatprep.subr.mxu0 0.0
      %587 = vmatpush1.msra.mxu0 0.0
      %588 = vmatprep.subr.mxu0 0.0
      %589 = vmatpush1.msra.mxu0 0.0
      %590 = vmatprep.subr.mxu0 0.0
      %591 = vmatpush1.msra.mxu0 0.0
      %592 = vmatprep.subr.mxu0 0.0
      %593 = vmatpush1.msra.mxu0 0.0
      %594 = vmatprep.subr.mxu0 0.0
      %595 = vmatpush1.msra.mxu0 0.0
      %596 = vmatprep.subr.mxu0 0.0
      %597 = vmatpush1.msra.mxu0 0.0
      %598 = vmatprep.subr.mxu0 0.0
      %599 = vmatpush1.msra.mxu0 0.0
      %600 = vmatprep.subr.mxu0 0.0
      %601 = vmatpush1.msra.mxu0 0.0
      %602 = vmatprep.subr.mxu0 0.0
      %603 = vmatpush1.msra.mxu0 0.0
      %604 = vmatprep.subr.mxu0 0.0
      %605 = vmatpush1.msra.mxu0 0.0
      %606 = vmatprep.mubr.f32.mxu0 0.0
      %607 = vmatmul.mubr.f32.gmra.mrb[0].mxu0 %v534
      %v608 = vpop.f32.mrb[0].mxu0
      %v609 = vadd.f32 0.0, %v608
      %v610 = vpop.f32.mrb[0].mxu0
      %v611 = vadd.f32 0.0, %v610
      %612 = vdwg.mxu0
      %613 = vmatprep.subr.mxu0 0.0
      %614 = vmatpush1.msra.mxu0 %v540
      %615 = vmatprep.subr.mxu0 0.0
      %616 = vmatpush1.msra.mxu0 0.0
      %617 = vmatprep.subr.mxu0 0.0
      %618 = vmatpush1.msra.mxu0 0.0
      %619 = vmatprep.subr.mxu0 0.0
      %620 = vmatpush1.msra.mxu0 0.0
      %621 = vmatprep.subr.mxu0 0.0
      %622 = vmatpush1.msra.mxu0 0.0
      %623 = vmatprep.subr.mxu0 0.0
      %624 = vmatpush1.msra.mxu0 0.0
      %625 = vmatprep.subr.mxu0 0.0
      %626 = vmatpush1.msra.mxu0 0.0
      %627 = vmatprep.subr.mxu0 0.0
      %628 = vmatpush1.msra.mxu0 0.0
      %629 = vmatprep.subr.mxu0 0.0
      %630 = vmatpush1.msra.mxu0 0.0
      %631 = vmatprep.subr.mxu0 0.0
      %632 = vmatpush1.msra.mxu0 0.0
      %633 = vmatprep.subr.mxu0 0.0
      %634 = vmatpush1.msra.mxu0 0.0
      %635 = vmatprep.subr.mxu0 0.0
      %636 = vmatpush1.msra.mxu0 0.0
      %637 = vmatprep.subr.mxu0 0.0
      %638 = vmatpush1.msra.mxu0 0.0
      %639 = vmatprep.subr.mxu0 0.0
      %640 = vmatpush1.msra.mxu0 0.0
      %641 = vmatprep.subr.mxu0 0.0
      %642 = vmatpush1.msra.mxu0 0.0
      %643 = vmatprep.subr.mxu0 0.0
      %644 = vmatpush1.msra.mxu0 0.0
      %645 = vmatprep.subr.mxu0 0.0
      %646 = vmatpush1.msra.mxu0 0.0
      %647 = vmatprep.subr.mxu0 0.0
      %648 = vmatpush1.msra.mxu0 0.0
      %649 = vmatprep.subr.mxu0 0.0
      %650 = vmatpush1.msra.mxu0 0.0
      %651 = vmatprep.subr.mxu0 0.0
      %652 = vmatpush1.msra.mxu0 0.0
      %653 = vmatprep.subr.mxu0 0.0
      %654 = vmatpush1.msra.mxu0 0.0
      %655 = vmatprep.subr.mxu0 0.0
      %656 = vmatpush1.msra.mxu0 0.0
      %657 = vmatprep.subr.mxu0 0.0
      %658 = vmatpush1.msra.mxu0 0.0
      %659 = vmatprep.subr.mxu0 0.0
      %660 = vmatpush1.msra.mxu0 0.0
      %661 = vmatprep.subr.mxu0 0.0
      %662 = vmatpush1.msra.mxu0 0.0
      %663 = vmatprep.subr.mxu0 0.0
      %664 = vmatpush1.msra.mxu0 0.0
      %665 = vmatprep.subr.mxu0 0.0
      %666 = vmatpush1.msra.mxu0 0.0
      %667 = vmatprep.subr.mxu0 0.0
      %668 = vmatpush1.msra.mxu0 0.0
      %669 = vmatprep.subr.mxu0 0.0
      %670 = vmatpush1.msra.mxu0 0.0
      %671 = vmatprep.subr.mxu0 0.0
      %672 = vmatpush1.msra.mxu0 0.0
      %673 = vmatprep.subr.mxu0 0.0
      %674 = vmatpush1.msra.mxu0 0.0
      %675 = vmatprep.subr.mxu0 0.0
      %676 = vmatpush1.msra.mxu0 0.0
      %677 = vmatprep.mubr.f32.mxu0 0.0
      %678 = vmatmul.mubr.f32.gmra.mrb[0].mxu0 %v534
      %v679 = vpop.f32.mrb[0].mxu0
      %v680 = vadd.f32 0.0, %v679
      %v681 = vpop.f32.mrb[0].mxu0
      %682 = vdwg.mxu0
      %v683 = vadd.f32 %v443, %v609
      %v684 = vadd.f32 %v445, %v611
      %v685 = vadd.f32 %v514, %v680
      %v686 = vld [vmem:[%s192] sm:$0xff]
      %v687 = vld [vmem:[%s192 + $0x8] sm:$0xf]
      %s688 = scalar_lea.vmem %s1, 24
      %v689 = vld [vmem:[%s688] sm:$0xff]
      %v692 = vcombine.high %v686, %v686
      %693 = vrot.lane.b32.xlu0 %v686, 110
      %v694 = vpop.permute.xlu0 %693
      %695 = vrot.lane.b32.xlu0 %v692, 110
      %v696 = vpop.permute.xlu0 %695
      %697 = vrot.lane.b32.xlu0 %v687, 110
      %v698 = vpop.permute.xlu0 %697
      %vm699 = vcmask 900096
      %v700 = vsel %vm699, %v694, %v696
      %v701 = vsel %vm699, %v696, %v698
      %v703 = vsel %vm215, %v689, 0
      %v705 = vsel %vm219, %v700, 0
      %v707 = vsel %vm219, %v701, 0
      %v709 = vsel %vm219, %v698, 0
      %711 = vmatprep.subr.mxu0 %v707
      %712 = vmatpush1.msra.mxu0 %v705
      %713 = vmatprep.subr.mxu0 0.0
      %714 = vmatpush1.msra.mxu0 0.0
      %715 = vmatprep.subr.mxu0 0.0
      %716 = vmatpush1.msra.mxu0 0.0
      %717 = vmatprep.subr.mxu0 0.0
      %718 = vmatpush1.msra.mxu0 0.0
      %719 = vmatprep.subr.mxu0 0.0
      %720 = vmatpush1.msra.mxu0 0.0
      %721 = vmatprep.subr.mxu0 0.0
      %722 = vmatpush1.msra.mxu0 0.0
      %723 = vmatprep.subr.mxu0 0.0
      %724 = vmatpush1.msra.mxu0 0.0
      %725 = vmatprep.subr.mxu0 0.0
      %726 = vmatpush1.msra.mxu0 0.0
      %727 = vmatprep.subr.mxu0 0.0
      %728 = vmatpush1.msra.mxu0 0.0
      %729 = vmatprep.subr.mxu0 0.0
      %730 = vmatpush1.msra.mxu0 0.0
      %731 = vmatprep.subr.mxu0 0.0
      %732 = vmatpush1.msra.mxu0 0.0
      %733 = vmatprep.subr.mxu0 0.0
      %734 = vmatpush1.msra.mxu0 0.0
      %735 = vmatprep.subr.mxu0 0.0
      %736 = vmatpush1.msra.mxu0 0.0
      %737 = vmatprep.subr.mxu0 0.0
      %738 = vmatpush1.msra.mxu0 0.0
      %739 = vmatprep.subr.mxu0 0.0
      %740 = vmatpush1.msra.mxu0 0.0
      %741 = vmatprep.subr.mxu0 0.0
      %742 = vmatpush1.msra.mxu0 0.0
      %743 = vmatprep.subr.mxu0 0.0
      %744 = vmatpush1.msra.mxu0 0.0
      %745 = vmatprep.subr.mxu0 0.0
      %746 = vmatpush1.msra.mxu0 0.0
      %747 = vmatprep.subr.mxu0 0.0
      %748 = vmatpush1.msra.mxu0 0.0
      %749 = vmatprep.subr.mxu0 0.0
      %750 = vmatpush1.msra.mxu0 0.0
      %751 = vmatprep.subr.mxu0 0.0
      %752 = vmatpush1.msra.mxu0 0.0
      %753 = vmatprep.subr.mxu0 0.0
      %754 = vmatpush1.msra.mxu0 0.0
      %755 = vmatprep.subr.mxu0 0.0
      %756 = vmatpush1.msra.mxu0 0.0
      %757 = vmatprep.subr.mxu0 0.0
      %758 = vmatpush1.msra.mxu0 0.0
      %759 = vmatprep.subr.mxu0 0.0
      %760 = vmatpush1.msra.mxu0 0.0
      %761 = vmatprep.subr.mxu0 0.0
      %762 = vmatpush1.msra.mxu0 0.0
      %763 = vmatprep.subr.mxu0 0.0
      %764 = vmatpush1.msra.mxu0 0.0
      %765 = vmatprep.subr.mxu0 0.0
      %766 = vmatpush1.msra.mxu0 0.0
      %767 = vmatprep.subr.mxu0 0.0
      %768 = vmatpush1.msra.mxu0 0.0
      %769 = vmatprep.subr.mxu0 0.0
      %770 = vmatpush1.msra.mxu0 0.0
      %771 = vmatprep.subr.mxu0 0.0
      %772 = vmatpush1.msra.mxu0 0.0
      %773 = vmatprep.subr.mxu0 0.0
      %774 = vmatpush1.msra.mxu0 0.0
      %775 = vmatprep.mubr.f32.mxu0 0.0
      %776 = vmatmul.mubr.f32.gmra.mrb[0].mxu0 %v703
      %v777 = vpop.f32.mrb[0].mxu0
      %v778 = vadd.f32 0.0, %v777
      %v779 = vpop.f32.mrb[0].mxu0
      %v780 = vadd.f32 0.0, %v779
      %781 = vdwg.mxu0
      %782 = vmatprep.subr.mxu0 0.0
      %783 = vmatpush1.msra.mxu0 %v709
      %784 = vmatprep.subr.mxu0 0.0
      %785 = vmatpush1.msra.mxu0 0.0
      %786 = vmatprep.subr.mxu0 0.0
      %787 = vmatpush1.msra.mxu0 0.0
      %788 = vmatprep.subr.mxu0 0.0
      %789 = vmatpush1.msra.mxu0 0.0
      %790 = vmatprep.subr.mxu0 0.0
      %791 = vmatpush1.msra.mxu0 0.0
      %792 = vmatprep.subr.mxu0 0.0
      %793 = vmatpush1.msra.mxu0 0.0
      %794 = vmatprep.subr.mxu0 0.0
      %795 = vmatpush1.msra.mxu0 0.0
      %796 = vmatprep.subr.mxu0 0.0
      %797 = vmatpush1.msra.mxu0 0.0
      %798 = vmatprep.subr.mxu0 0.0
      %799 = vmatpush1.msra.mxu0 0.0
      %800 = vmatprep.subr.mxu0 0.0
      %801 = vmatpush1.msra.mxu0 0.0
      %802 = vmatprep.subr.mxu0 0.0
      %803 = vmatpush1.msra.mxu0 0.0
      %804 = vmatprep.subr.mxu0 0.0
      %805 = vmatpush1.msra.mxu0 0.0
      %806 = vmatprep.subr.mxu0 0.0
      %807 = vmatpush1.msra.mxu0 0.0
      %808 = vmatprep.subr.mxu0 0.0
      %809 = vmatpush1.msra.mxu0 0.0
      %810 = vmatprep.subr.mxu0 0.0
      %811 = vmatpush1.msra.mxu0 0.0
      %812 = vmatprep.subr.mxu0 0.0
      %813 = vmatpush1.msra.mxu0 0.0
      %814 = vmatprep.subr.mxu0 0.0
      %815 = vmatpush1.msra.mxu0 0.0
      %816 = vmatprep.subr.mxu0 0.0
      %817 = vmatpush1.msra.mxu0 0.0
      %818 = vmatprep.subr.mxu0 0.0
      %819 = vmatpush1.msra.mxu0 0.0
      %820 = vmatprep.subr.mxu0 0.0
      %821 = vmatpush1.msra.mxu0 0.0
      %822 = vmatprep.subr.mxu0 0.0
      %823 = vmatpush1.msra.mxu0 0.0
      %824 = vmatprep.subr.mxu0 0.0
      %825 = vmatpush1.msra.mxu0 0.0
      %826 = vmatprep.subr.mxu0 0.0
      %827 = vmatpush1.msra.mxu0 0.0
      %828 = vmatprep.subr.mxu0 0.0
      %829 = vmatpush1.msra.mxu0 0.0
      %830 = vmatprep.subr.mxu0 0.0
      %831 = vmatpush1.msra.mxu0 0.0
      %832 = vmatprep.subr.mxu0 0.0
      %833 = vmatpush1.msra.mxu0 0.0
      %834 = vmatprep.subr.mxu0 0.0
      %835 = vmatpush1.msra.mxu0 0.0
      %836 = vmatprep.subr.mxu0 0.0
      %837 = vmatpush1.msra.mxu0 0.0
      %838 = vmatprep.subr.mxu0 0.0
      %839 = vmatpush1.msra.mxu0 0.0
      %840 = vmatprep.subr.mxu0 0.0
      %841 = vmatpush1.msra.mxu0 0.0
      %842 = vmatprep.subr.mxu0 0.0
      %843 = vmatpush1.msra.mxu0 0.0
      %844 = vmatprep.subr.mxu0 0.0
      %845 = vmatpush1.msra.mxu0 0.0
      %846 = vmatprep.mubr.f32.mxu0 0.0
      %847 = vmatmul.mubr.f32.gmra.mrb[0].mxu0 %v703
      %v848 = vpop.f32.mrb[0].mxu0
      %v849 = vadd.f32 0.0, %v848
      %v850 = vpop.f32.mrb[0].mxu0
      %851 = vdwg.mxu0
      %v852 = vadd.f32 %v683, %v778
      %v853 = vadd.f32 %v684, %v780
      %v854 = vadd.f32 %v685, %v849
      %v855 = vld [vmem:[%s192] sm:$0xff]
      %v856 = vld [vmem:[%s192 + $0x8] sm:$0xf]
      %s857 = scalar_lea.vmem %s1, 32
      %v858 = vld [vmem:[%s857] sm:$0xff]
      %v861 = vcombine.high %v855, %v855
      %862 = vrot.lane.b32.xlu0 %v855, 109
      %v863 = vpop.permute.xlu0 %862
      %864 = vrot.lane.b32.xlu0 %v861, 109
      %v865 = vpop.permute.xlu0 %864
      %866 = vrot.lane.b32.xlu0 %v856, 109
      %v867 = vpop.permute.xlu0 %866
      %vm868 = vcmask 891904
      %v869 = vsel %vm868, %v863, %v865
      %v870 = vsel %vm868, %v865, %v867
      %v872 = vsel %vm215, %v858, 0
      %v874 = vsel %vm219, %v869, 0
      %v876 = vsel %vm219, %v870, 0
      %v878 = vsel %vm219, %v867, 0
      %880 = vmatprep.subr.mxu0 %v876
      %881 = vmatpush1.msra.mxu0 %v874
      %882 = vmatprep.subr.mxu0 0.0
      %883 = vmatpush1.msra.mxu0 0.0
      %884 = vmatprep.subr.mxu0 0.0
      %885 = vmatpush1.msra.mxu0 0.0
      %886 = vmatprep.subr.mxu0 0.0
      %887 = vmatpush1.msra.mxu0 0.0
      %888 = vmatprep.subr.mxu0 0.0
      %889 = vmatpush1.msra.mxu0 0.0
      %890 = vmatprep.subr.mxu0 0.0
      %891 = vmatpush1.msra.mxu0 0.0
      %892 = vmatprep.subr.mxu0 0.0
      %893 = vmatpush1.msra.mxu0 0.0
      %894 = vmatprep.subr.mxu0 0.0
      %895 = vmatpush1.msra.mxu0 0.0
      %896 = vmatprep.subr.mxu0 0.0
      %897 = vmatpush1.msra.mxu0 0.0
      %898 = vmatprep.subr.mxu0 0.0
      %899 = vmatpush1.msra.mxu0 0.0
      %900 = vmatprep.subr.mxu0 0.0
      %901 = vmatpush1.msra.mxu0 0.0
      %902 = vmatprep.subr.mxu0 0.0
      %903 = vmatpush1.msra.mxu0 0.0
      %904 = vmatprep.subr.mxu0 0.0
      %905 = vmatpush1.msra.mxu0 0.0
      %906 = vmatprep.subr.mxu0 0.0
      %907 = vmatpush1.msra.mxu0 0.0
      %908 = vmatprep.subr.mxu0 0.0
      %909 = vmatpush1.msra.mxu0 0.0
      %910 = vmatprep.subr.mxu0 0.0
      %911 = vmatpush1.msra.mxu0 0.0
      %912 = vmatprep.subr.mxu0 0.0
      %913 = vmatpush1.msra.mxu0 0.0
      %914 = vmatprep.subr.mxu0 0.0
      %915 = vmatpush1.msra.mxu0 0.0
      %916 = vmatprep.subr.mxu0 0.0
      %917 = vmatpush1.msra.mxu0 0.0
      %918 = vmatprep.subr.mxu0 0.0
      %919 = vmatpush1.msra.mxu0 0.0
      %920 = vmatprep.subr.mxu0 0.0
      %921 = vmatpush1.msra.mxu0 0.0
      %922 = vmatprep.subr.mxu0 0.0
      %923 = vmatpush1.msra.mxu0 0.0
      %924 = vmatprep.subr.mxu0 0.0
      %925 = vmatpush1.msra.mxu0 0.0
      %926 = vmatprep.subr.mxu0 0.0
      %927 = vmatpush1.msra.mxu0 0.0
      %928 = vmatprep.subr.mxu0 0.0
      %929 = vmatpush1.msra.mxu0 0.0
      %930 = vmatprep.subr.mxu0 0.0
      %931 = vmatpush1.msra.mxu0 0.0
      %932 = vmatprep.subr.mxu0 0.0
      %933 = vmatpush1.msra.mxu0 0.0
      %934 = vmatprep.subr.mxu0 0.0
      %935 = vmatpush1.msra.mxu0 0.0
      %936 = vmatprep.subr.mxu0 0.0
      %937 = vmatpush1.msra.mxu0 0.0
      %938 = vmatprep.subr.mxu0 0.0
      %939 = vmatpush1.msra.mxu0 0.0
      %940 = vmatprep.subr.mxu0 0.0
      %941 = vmatpush1.msra.mxu0 0.0
      %942 = vmatprep.subr.mxu0 0.0
      %943 = vmatpush1.msra.mxu0 0.0
      %944 = vmatprep.mubr.f32.mxu0 0.0
      %945 = vmatmul.mubr.f32.gmra.mrb[0].mxu0 %v872
      %v946 = vpop.f32.mrb[0].mxu0
      %v947 = vadd.f32 0.0, %v946
      %v948 = vpop.f32.mrb[0].mxu0
      %v949 = vadd.f32 0.0, %v948
      %950 = vdwg.mxu0
      %951 = vmatprep.subr.mxu0 0.0
      %952 = vmatpush1.msra.mxu0 %v878
      %953 = vmatprep.subr.mxu0 0.0
      %954 = vmatpush1.msra.mxu0 0.0
      %955 = vmatprep.subr.mxu0 0.0
      %956 = vmatpush1.msra.mxu0 0.0
      %957 = vmatprep.subr.mxu0 0.0
      %958 = vmatpush1.msra.mxu0 0.0
      %959 = vmatprep.subr.mxu0 0.0
      %960 = vmatpush1.msra.mxu0 0.0
      %961 = vmatprep.subr.mxu0 0.0
      %962 = vmatpush1.msra.mxu0 0.0
      %963 = vmatprep.subr.mxu0 0.0
      %964 = vmatpush1.msra.mxu0 0.0
      %965 = vmatprep.subr.mxu0 0.0
      %966 = vmatpush1.msra.mxu0 0.0
      %967 = vmatprep.subr.mxu0 0.0
      %968 = vmatpush1.msra.mxu0 0.0
      %969 = vmatprep.subr.mxu0 0.0
      %970 = vmatpush1.msra.mxu0 0.0
      %971 = vmatprep.subr.mxu0 0.0
      %972 = vmatpush1.msra.mxu0 0.0
      %973 = vmatprep.subr.mxu0 0.0
      %974 = vmatpush1.msra.mxu0 0.0
      %975 = vmatprep.subr.mxu0 0.0
      %976 = vmatpush1.msra.mxu0 0.0
      %977 = vmatprep.subr.mxu0 0.0
      %978 = vmatpush1.msra.mxu0 0.0
      %979 = vmatprep.subr.mxu0 0.0
      %980 = vmatpush1.msra.mxu0 0.0
      %981 = vmatprep.subr.mxu0 0.0
      %982 = vmatpush1.msra.mxu0 0.0
      %983 = vmatprep.subr.mxu0 0.0
      %984 = vmatpush1.msra.mxu0 0.0
      %985 = vmatprep.subr.mxu0 0.0
      %986 = vmatpush1.msra.mxu0 0.0
      %987 = vmatprep.subr.mxu0 0.0
      %988 = vmatpush1.msra.mxu0 0.0
      %989 = vmatprep.subr.mxu0 0.0
      %990 = vmatpush1.msra.mxu0 0.0
      %991 = vmatprep.subr.mxu0 0.0
      %992 = vmatpush1.msra.mxu0 0.0
      %993 = vmatprep.subr.mxu0 0.0
      %994 = vmatpush1.msra.mxu0 0.0
      %995 = vmatprep.subr.mxu0 0.0
      %996 = vmatpush1.msra.mxu0 0.0
      %997 = vmatprep.subr.mxu0 0.0
      %998 = vmatpush1.msra.mxu0 0.0
      %999 = vmatprep.subr.mxu0 0.0
      %1000 = vmatpush1.msra.mxu0 0.0
      %1001 = vmatprep.subr.mxu0 0.0
      %1002 = vmatpush1.msra.mxu0 0.0
      %1003 = vmatprep.subr.mxu0 0.0
      %1004 = vmatpush1.msra.mxu0 0.0
      %1005 = vmatprep.subr.mxu0 0.0
      %1006 = vmatpush1.msra.mxu0 0.0
      %1007 = vmatprep.subr.mxu0 0.0
      %1008 = vmatpush1.msra.mxu0 0.0
      %1009 = vmatprep.subr.mxu0 0.0
      %1010 = vmatpush1.msra.mxu0 0.0
      %1011 = vmatprep.subr.mxu0 0.0
      %1012 = vmatpush1.msra.mxu0 0.0
      %1013 = vmatprep.subr.mxu0 0.0
      %1014 = vmatpush1.msra.mxu0 0.0
      %1015 = vmatprep.mubr.f32.mxu0 0.0
      %1016 = vmatmul.mubr.f32.gmra.mrb[0].mxu0 %v872
      %v1017 = vpop.f32.mrb[0].mxu0
      %v1018 = vadd.f32 0.0, %v1017
      %v1019 = vpop.f32.mrb[0].mxu0
      %1020 = vdwg.mxu0
      %v1021 = vadd.f32 %v852, %v947
      %v1022 = vadd.f32 %v853, %v949
      %v1023 = vadd.f32 %v854, %v1018
      %v1024 = vld [vmem:[%s192] sm:$0xff]
      %v1025 = vld [vmem:[%s192 + $0x8] sm:$0xf]
      %s1026 = scalar_lea.vmem %s1, 40
      %v1027 = vld [vmem:[%s1026] sm:$0xff]
      %v1030 = vcombine.high %v1024, %v1024
      %1031 = vrot.lane.b32.xlu0 %v1024, 108
      %v1032 = vpop.permute.xlu0 %1031
      %1033 = vrot.lane.b32.xlu0 %v1030, 108
      %v1034 = vpop.permute.xlu0 %1033
      %1035 = vrot.lane.b32.xlu0 %v1025, 108
      %v1036 = vpop.permute.xlu0 %1035
      %vm1037 = vcmask 883712
      %v1038 = vsel %vm1037, %v1032, %v1034
      %v1039 = vsel %vm1037, %v1034, %v1036
      %v1041 = vsel %vm215, %v1027, 0
      %v1043 = vsel %vm219, %v1038, 0
      %v1045 = vsel %vm219, %v1039, 0
      %v1047 = vsel %vm219, %v1036, 0
      %1049 = vmatprep.subr.mxu0 %v1045
      %1050 = vmatpush1.msra.mxu0 %v1043
      %1051 = vmatprep.subr.mxu0 0.0
      %1052 = vmatpush1.msra.mxu0 0.0
      %1053 = vmatprep.subr.mxu0 0.0
      %1054 = vmatpush1.msra.mxu0 0.0
      %1055 = vmatprep.subr.mxu0 0.0
      %1056 = vmatpush1.msra.mxu0 0.0
      %1057 = vmatprep.subr.mxu0 0.0
      %1058 = vmatpush1.msra.mxu0 0.0
      %1059 = vmatprep.subr.mxu0 0.0
      %1060 = vmatpush1.msra.mxu0 0.0
      %1061 = vmatprep.subr.mxu0 0.0
      %1062 = vmatpush1.msra.mxu0 0.0
      %1063 = vmatprep.subr.mxu0 0.0
      %1064 = vmatpush1.msra.mxu0 0.0
      %1065 = vmatprep.subr.mxu0 0.0
      %1066 = vmatpush1.msra.mxu0 0.0
      %1067 = vmatprep.subr.mxu0 0.0
      %1068 = vmatpush1.msra.mxu0 0.0
      %1069 = vmatprep.subr.mxu0 0.0
      %1070 = vmatpush1.msra.mxu0 0.0
      %1071 = vmatprep.subr.mxu0 0.0
      %1072 = vmatpush1.msra.mxu0 0.0
      %1073 = vmatprep.subr.mxu0 0.0
      %1074 = vmatpush1.msra.mxu0 0.0
      %1075 = vmatprep.subr.mxu0 0.0
      %1076 = vmatpush1.msra.mxu0 0.0
      %1077 = vmatprep.subr.mxu0 0.0
      %1078 = vmatpush1.msra.mxu0 0.0
      %1079 = vmatprep.subr.mxu0 0.0
      %1080 = vmatpush1.msra.mxu0 0.0
      %1081 = vmatprep.subr.mxu0 0.0
      %1082 = vmatpush1.msra.mxu0 0.0
      %1083 = vmatprep.subr.mxu0 0.0
      %1084 = vmatpush1.msra.mxu0 0.0
      %1085 = vmatprep.subr.mxu0 0.0
      %1086 = vmatpush1.msra.mxu0 0.0
      %1087 = vmatprep.subr.mxu0 0.0
      %1088 = vmatpush1.msra.mxu0 0.0
      %1089 = vmatprep.subr.mxu0 0.0
      %1090 = vmatpush1.msra.mxu0 0.0
      %1091 = vmatprep.subr.mxu0 0.0
      %1092 = vmatpush1.msra.mxu0 0.0
      %1093 = vmatprep.subr.mxu0 0.0
      %1094 = vmatpush1.msra.mxu0 0.0
      %1095 = vmatprep.subr.mxu0 0.0
      %1096 = vmatpush1.msra.mxu0 0.0
      %1097 = vmatprep.subr.mxu0 0.0
      %1098 = vmatpush1.msra.mxu0 0.0
      %1099 = vmatprep.subr.mxu0 0.0
      %1100 = vmatpush1.msra.mxu0 0.0
      %1101 = vmatprep.subr.mxu0 0.0
      %1102 = vmatpush1.msra.mxu0 0.0
      %1103 = vmatprep.subr.mxu0 0.0
      %1104 = vmatpush1.msra.mxu0 0.0
      %1105 = vmatprep.subr.mxu0 0.0
      %1106 = vmatpush1.msra.mxu0 0.0
      %1107 = vmatprep.subr.mxu0 0.0
      %1108 = vmatpush1.msra.mxu0 0.0
      %1109 = vmatprep.subr.mxu0 0.0
      %1110 = vmatpush1.msra.mxu0 0.0
      %1111 = vmatprep.subr.mxu0 0.0
      %1112 = vmatpush1.msra.mxu0 0.0
      %1113 = vmatprep.mubr.f32.mxu0 0.0
      %1114 = vmatmul.mubr.f32.gmra.mrb[0].mxu0 %v1041
      %v1115 = vpop.f32.mrb[0].mxu0
      %v1116 = vadd.f32 0.0, %v1115
      %v1117 = vpop.f32.mrb[0].mxu0
      %v1118 = vadd.f32 0.0, %v1117
      %1119 = vdwg.mxu0
      %1120 = vmatprep.subr.mxu0 0.0
      %1121 = vmatpush1.msra.mxu0 %v1047
      %1122 = vmatprep.subr.mxu0 0.0
      %1123 = vmatpush1.msra.mxu0 0.0
      %1124 = vmatprep.subr.mxu0 0.0
      %1125 = vmatpush1.msra.mxu0 0.0
      %1126 = vmatprep.subr.mxu0 0.0
      %1127 = vmatpush1.msra.mxu0 0.0
      %1128 = vmatprep.subr.mxu0 0.0
      %1129 = vmatpush1.msra.mxu0 0.0
      %1130 = vmatprep.subr.mxu0 0.0
      %1131 = vmatpush1.msra.mxu0 0.0
      %1132 = vmatprep.subr.mxu0 0.0
      %1133 = vmatpush1.msra.mxu0 0.0
      %1134 = vmatprep.subr.mxu0 0.0
      %1135 = vmatpush1.msra.mxu0 0.0
      %1136 = vmatprep.subr.mxu0 0.0
      %1137 = vmatpush1.msra.mxu0 0.0
      %1138 = vmatprep.subr.mxu0 0.0
      %1139 = vmatpush1.msra.mxu0 0.0
      %1140 = vmatprep.subr.mxu0 0.0
      %1141 = vmatpush1.msra.mxu0 0.0
      %1142 = vmatprep.subr.mxu0 0.0
      %1143 = vmatpush1.msra.mxu0 0.0
      %1144 = vmatprep.subr.mxu0 0.0
      %1145 = vmatpush1.msra.mxu0 0.0
      %1146 = vmatprep.subr.mxu0 0.0
      %1147 = vmatpush1.msra.mxu0 0.0
      %1148 = vmatprep.subr.mxu0 0.0
      %1149 = vmatpush1.msra.mxu0 0.0
      %1150 = vmatprep.subr.mxu0 0.0
      %1151 = vmatpush1.msra.mxu0 0.0
      %1152 = vmatprep.subr.mxu0 0.0
      %1153 = vmatpush1.msra.mxu0 0.0
      %1154 = vmatprep.subr.mxu0 0.0
      %1155 = vmatpush1.msra.mxu0 0.0
      %1156 = vmatprep.subr.mxu0 0.0
      %1157 = vmatpush1.msra.mxu0 0.0
      %1158 = vmatprep.subr.mxu0 0.0
      %1159 = vmatpush1.msra.mxu0 0.0
      %1160 = vmatprep.subr.mxu0 0.0
      %1161 = vmatpush1.msra.mxu0 0.0
      %1162 = vmatprep.subr.mxu0 0.0
      %1163 = vmatpush1.msra.mxu0 0.0
      %1164 = vmatprep.subr.mxu0 0.0
      %1165 = vmatpush1.msra.mxu0 0.0
      %1166 = vmatprep.subr.mxu0 0.0
      %1167 = vmatpush1.msra.mxu0 0.0
      %1168 = vmatprep.subr.mxu0 0.0
      %1169 = vmatpush1.msra.mxu0 0.0
      %1170 = vmatprep.subr.mxu0 0.0
      %1171 = vmatpush1.msra.mxu0 0.0
      %1172 = vmatprep.subr.mxu0 0.0
      %1173 = vmatpush1.msra.mxu0 0.0
      %1174 = vmatprep.subr.mxu0 0.0
      %1175 = vmatpush1.msra.mxu0 0.0
      %1176 = vmatprep.subr.mxu0 0.0
      %1177 = vmatpush1.msra.mxu0 0.0
      %1178 = vmatprep.subr.mxu0 0.0
      %1179 = vmatpush1.msra.mxu0 0.0
      %1180 = vmatprep.subr.mxu0 0.0
      %1181 = vmatpush1.msra.mxu0 0.0
      %1182 = vmatprep.subr.mxu0 0.0
      %1183 = vmatpush1.msra.mxu0 0.0
      %1184 = vmatprep.mubr.f32.mxu0 0.0
      %1185 = vmatmul.mubr.f32.gmra.mrb[0].mxu0 %v1041
      %v1186 = vpop.f32.mrb[0].mxu0
      %v1187 = vadd.f32 0.0, %v1186
      %v1188 = vpop.f32.mrb[0].mxu0
      %1189 = vdwg.mxu0
      %v1190 = vadd.f32 %v1021, %v1116
      %v1191 = vadd.f32 %v1022, %v1118
      %v1192 = vadd.f32 %v1023, %v1187
      %v1193 = vld [vmem:[%s192] sm:$0xff]
      %v1194 = vld [vmem:[%s192 + $0x8] sm:$0xf]
      %s1195 = scalar_lea.vmem %s1, 48
      %v1196 = vld [vmem:[%s1195] sm:$0xff]
      %v1199 = vcombine.high %v1193, %v1193
      %1200 = vrot.lane.b32.xlu0 %v1193, 92
      %v1201 = vpop.permute.xlu0 %1200
      %1202 = vrot.lane.b32.xlu0 %v1199, 92
      %v1203 = vpop.permute.xlu0 %1202
      %1204 = vrot.lane.b32.xlu0 %v1194, 92
      %v1205 = vpop.permute.xlu0 %1204
      %vm1206 = vcmask 752640
      %v1207 = vsel %vm1206, %v1201, %v1203
      %v1208 = vsel %vm1206, %v1203, %v1205
      %v1210 = vsel %vm215, %v1196, 0
      %v1212 = vsel %vm219, %v1207, 0
      %v1214 = vsel %vm219, %v1208, 0
      %v1216 = vsel %vm219, %v1205, 0
      %1218 = vmatprep.subr.mxu0 %v1214
      %1219 = vmatpush1.msra.mxu0 %v1212
      %1220 = vmatprep.subr.mxu0 0.0
      %1221 = vmatpush1.msra.mxu0 0.0
      %1222 = vmatprep.subr.mxu0 0.0
      %1223 = vmatpush1.msra.mxu0 0.0
      %1224 = vmatprep.subr.mxu0 0.0
      %1225 = vmatpush1.msra.mxu0 0.0
      %1226 = vmatprep.subr.mxu0 0.0
      %1227 = vmatpush1.msra.mxu0 0.0
      %1228 = vmatprep.subr.mxu0 0.0
      %1229 = vmatpush1.msra.mxu0 0.0
      %1230 = vmatprep.subr.mxu0 0.0
      %1231 = vmatpush1.msra.mxu0 0.0
      %1232 = vmatprep.subr.mxu0 0.0
      %1233 = vmatpush1.msra.mxu0 0.0
      %1234 = vmatprep.subr.mxu0 0.0
      %1235 = vmatpush1.msra.mxu0 0.0
      %1236 = vmatprep.subr.mxu0 0.0
      %1237 = vmatpush1.msra.mxu0 0.0
      %1238 = vmatprep.subr.mxu0 0.0
      %1239 = vmatpush1.msra.mxu0 0.0
      %1240 = vmatprep.subr.mxu0 0.0
      %1241 = vmatpush1.msra.mxu0 0.0
      %1242 = vmatprep.subr.mxu0 0.0
      %1243 = vmatpush1.msra.mxu0 0.0
      %1244 = vmatprep.subr.mxu0 0.0
      %1245 = vmatpush1.msra.mxu0 0.0
      %1246 = vmatprep.subr.mxu0 0.0
      %1247 = vmatpush1.msra.mxu0 0.0
      %1248 = vmatprep.subr.mxu0 0.0
      %1249 = vmatpush1.msra.mxu0 0.0
      %1250 = vmatprep.subr.mxu0 0.0
      %1251 = vmatpush1.msra.mxu0 0.0
      %1252 = vmatprep.subr.mxu0 0.0
      %1253 = vmatpush1.msra.mxu0 0.0
      %1254 = vmatprep.subr.mxu0 0.0
      %1255 = vmatpush1.msra.mxu0 0.0
      %1256 = vmatprep.subr.mxu0 0.0
      %1257 = vmatpush1.msra.mxu0 0.0
      %1258 = vmatprep.subr.mxu0 0.0
      %1259 = vmatpush1.msra.mxu0 0.0
      %1260 = vmatprep.subr.mxu0 0.0
      %1261 = vmatpush1.msra.mxu0 0.0
      %1262 = vmatprep.subr.mxu0 0.0
      %1263 = vmatpush1.msra.mxu0 0.0
      %1264 = vmatprep.subr.mxu0 0.0
      %1265 = vmatpush1.msra.mxu0 0.0
      %1266 = vmatprep.subr.mxu0 0.0
      %1267 = vmatpush1.msra.mxu0 0.0
      %1268 = vmatprep.subr.mxu0 0.0
      %1269 = vmatpush1.msra.mxu0 0.0
      %1270 = vmatprep.subr.mxu0 0.0
      %1271 = vmatpush1.msra.mxu0 0.0
      %1272 = vmatprep.subr.mxu0 0.0
      %1273 = vmatpush1.msra.mxu0 0.0
      %1274 = vmatprep.subr.mxu0 0.0
      %1275 = vmatpush1.msra.mxu0 0.0
      %1276 = vmatprep.subr.mxu0 0.0
      %1277 = vmatpush1.msra.mxu0 0.0
      %1278 = vmatprep.subr.mxu0 0.0
      %1279 = vmatpush1.msra.mxu0 0.0
      %1280 = vmatprep.subr.mxu0 0.0
      %1281 = vmatpush1.msra.mxu0 0.0
      %1282 = vmatprep.mubr.f32.mxu0 0.0
      %1283 = vmatmul.mubr.f32.gmra.mrb[0].mxu0 %v1210
      %v1284 = vpop.f32.mrb[0].mxu0
      %v1285 = vadd.f32 0.0, %v1284
      %v1286 = vpop.f32.mrb[0].mxu0
      %v1287 = vadd.f32 0.0, %v1286
      %1288 = vdwg.mxu0
      %1289 = vmatprep.subr.mxu0 0.0
      %1290 = vmatpush1.msra.mxu0 %v1216
      %1291 = vmatprep.subr.mxu0 0.0
      %1292 = vmatpush1.msra.mxu0 0.0
      %1293 = vmatprep.subr.mxu0 0.0
      %1294 = vmatpush1.msra.mxu0 0.0
      %1295 = vmatprep.subr.mxu0 0.0
      %1296 = vmatpush1.msra.mxu0 0.0
      %1297 = vmatprep.subr.mxu0 0.0
      %1298 = vmatpush1.msra.mxu0 0.0
      %1299 = vmatprep.subr.mxu0 0.0
      %1300 = vmatpush1.msra.mxu0 0.0
      %1301 = vmatprep.subr.mxu0 0.0
      %1302 = vmatpush1.msra.mxu0 0.0
      %1303 = vmatprep.subr.mxu0 0.0
      %1304 = vmatpush1.msra.mxu0 0.0
      %1305 = vmatprep.subr.mxu0 0.0
      %1306 = vmatpush1.msra.mxu0 0.0
      %1307 = vmatprep.subr.mxu0 0.0
      %1308 = vmatpush1.msra.mxu0 0.0
      %1309 = vmatprep.subr.mxu0 0.0
      %1310 = vmatpush1.msra.mxu0 0.0
      %1311 = vmatprep.subr.mxu0 0.0
      %1312 = vmatpush1.msra.mxu0 0.0
      %1313 = vmatprep.subr.mxu0 0.0
      %1314 = vmatpush1.msra.mxu0 0.0
      %1315 = vmatprep.subr.mxu0 0.0
      %1316 = vmatpush1.msra.mxu0 0.0
      %1317 = vmatprep.subr.mxu0 0.0
      %1318 = vmatpush1.msra.mxu0 0.0
      %1319 = vmatprep.subr.mxu0 0.0
      %1320 = vmatpush1.msra.mxu0 0.0
      %1321 = vmatprep.subr.mxu0 0.0
      %1322 = vmatpush1.msra.mxu0 0.0
      %1323 = vmatprep.subr.mxu0 0.0
      %1324 = vmatpush1.msra.mxu0 0.0
      %1325 = vmatprep.subr.mxu0 0.0
      %1326 = vmatpush1.msra.mxu0 0.0
      %1327 = vmatprep.subr.mxu0 0.0
      %1328 = vmatpush1.msra.mxu0 0.0
      %1329 = vmatprep.subr.mxu0 0.0
      %1330 = vmatpush1.msra.mxu0 0.0
      %1331 = vmatprep.subr.mxu0 0.0
      %1332 = vmatpush1.msra.mxu0 0.0
      %1333 = vmatprep.subr.mxu0 0.0
      %1334 = vmatpush1.msra.mxu0 0.0
      %1335 = vmatprep.subr.mxu0 0.0
      %1336 = vmatpush1.msra.mxu0 0.0
      %1337 = vmatprep.subr.mxu0 0.0
      %1338 = vmatpush1.msra.mxu0 0.0
      %1339 = vmatprep.subr.mxu0 0.0
      %1340 = vmatpush1.msra.mxu0 0.0
      %1341 = vmatprep.subr.mxu0 0.0
      %1342 = vmatpush1.msra.mxu0 0.0
      %1343 = vmatprep.subr.mxu0 0.0
      %1344 = vmatpush1.msra.mxu0 0.0
      %1345 = vmatprep.subr.mxu0 0.0
      %1346 = vmatpush1.msra.mxu0 0.0
      %1347 = vmatprep.subr.mxu0 0.0
      %1348 = vmatpush1.msra.mxu0 0.0
      %1349 = vmatprep.subr.mxu0 0.0
      %1350 = vmatpush1.msra.mxu0 0.0
      %1351 = vmatprep.subr.mxu0 0.0
      %1352 = vmatpush1.msra.mxu0 0.0
      %1353 = vmatprep.mubr.f32.mxu0 0.0
      %1354 = vmatmul.mubr.f32.gmra.mrb[0].mxu0 %v1210
      %v1355 = vpop.f32.mrb[0].mxu0
      %v1356 = vadd.f32 0.0, %v1355
      %v1357 = vpop.f32.mrb[0].mxu0
      %1358 = vdwg.mxu0
      %v1359 = vadd.f32 %v1190, %v1285
      %v1360 = vadd.f32 %v1191, %v1287
      %v1361 = vadd.f32 %v1192, %v1356
      %v1362 = vld [vmem:[%s192] sm:$0xff]
      %v1363 = vld [vmem:[%s192 + $0x8] sm:$0xf]
      %s1364 = scalar_lea.vmem %s1, 56
      %v1365 = vld [vmem:[%s1364] sm:$0xff]
      %v1368 = vcombine.high %v1362, %v1362
      %1369 = vrot.lane.b32.xlu0 %v1362, 91
      %v1370 = vpop.permute.xlu0 %1369
      %1371 = vrot.lane.b32.xlu0 %v1368, 91
      %v1372 = vpop.permute.xlu0 %1371
      %1373 = vrot.lane.b32.xlu0 %v1363, 91
      %v1374 = vpop.permute.xlu0 %1373
      %vm1375 = vcmask 744448
      %v1376 = vsel %vm1375, %v1370, %v1372
      %v1377 = vsel %vm1375, %v1372, %v1374
      %v1379 = vsel %vm215, %v1365, 0
      %v1381 = vsel %vm219, %v1376, 0
      %v1383 = vsel %vm219, %v1377, 0
      %v1385 = vsel %vm219, %v1374, 0
      %1387 = vmatprep.subr.mxu0 %v1383
      %1388 = vmatpush1.msra.mxu0 %v1381
      %1389 = vmatprep.subr.mxu0 0.0
      %1390 = vmatpush1.msra.mxu0 0.0
      %1391 = vmatprep.subr.mxu0 0.0
      %1392 = vmatpush1.msra.mxu0 0.0
      %1393 = vmatprep.subr.mxu0 0.0
      %1394 = vmatpush1.msra.mxu0 0.0
      %1395 = vmatprep.subr.mxu0 0.0
      %1396 = vmatpush1.msra.mxu0 0.0
      %1397 = vmatprep.subr.mxu0 0.0
      %1398 = vmatpush1.msra.mxu0 0.0
      %1399 = vmatprep.subr.mxu0 0.0
      %1400 = vmatpush1.msra.mxu0 0.0
      %1401 = vmatprep.subr.mxu0 0.0
      %1402 = vmatpush1.msra.mxu0 0.0
      %1403 = vmatprep.subr.mxu0 0.0
      %1404 = vmatpush1.msra.mxu0 0.0
      %1405 = vmatprep.subr.mxu0 0.0
      %1406 = vmatpush1.msra.mxu0 0.0
      %1407 = vmatprep.subr.mxu0 0.0
      %1408 = vmatpush1.msra.mxu0 0.0
      %1409 = vmatprep.subr.mxu0 0.0
      %1410 = vmatpush1.msra.mxu0 0.0
      %1411 = vmatprep.subr.mxu0 0.0
      %1412 = vmatpush1.msra.mxu0 0.0
      %1413 = vmatprep.subr.mxu0 0.0
      %1414 = vmatpush1.msra.mxu0 0.0
      %1415 = vmatprep.subr.mxu0 0.0
      %1416 = vmatpush1.msra.mxu0 0.0
      %1417 = vmatprep.subr.mxu0 0.0
      %1418 = vmatpush1.msra.mxu0 0.0
      %1419 = vmatprep.subr.mxu0 0.0
      %1420 = vmatpush1.msra.mxu0 0.0
      %1421 = vmatprep.subr.mxu0 0.0
      %1422 = vmatpush1.msra.mxu0 0.0
      %1423 = vmatprep.subr.mxu0 0.0
      %1424 = vmatpush1.msra.mxu0 0.0
      %1425 = vmatprep.subr.mxu0 0.0
      %1426 = vmatpush1.msra.mxu0 0.0
      %1427 = vmatprep.subr.mxu0 0.0
      %1428 = vmatpush1.msra.mxu0 0.0
      %1429 = vmatprep.subr.mxu0 0.0
      %1430 = vmatpush1.msra.mxu0 0.0
      %1431 = vmatprep.subr.mxu0 0.0
      %1432 = vmatpush1.msra.mxu0 0.0
      %1433 = vmatprep.subr.mxu0 0.0
      %1434 = vmatpush1.msra.mxu0 0.0
      %1435 = vmatprep.subr.mxu0 0.0
      %1436 = vmatpush1.msra.mxu0 0.0
      %1437 = vmatprep.subr.mxu0 0.0
      %1438 = vmatpush1.msra.mxu0 0.0
      %1439 = vmatprep.subr.mxu0 0.0
      %1440 = vmatpush1.msra.mxu0 0.0
      %1441 = vmatprep.subr.mxu0 0.0
      %1442 = vmatpush1.msra.mxu0 0.0
      %1443 = vmatprep.subr.mxu0 0.0
      %1444 = vmatpush1.msra.mxu0 0.0
      %1445 = vmatprep.subr.mxu0 0.0
      %1446 = vmatpush1.msra.mxu0 0.0
      %1447 = vmatprep.subr.mxu0 0.0
      %1448 = vmatpush1.msra.mxu0 0.0
      %1449 = vmatprep.subr.mxu0 0.0
      %1450 = vmatpush1.msra.mxu0 0.0
      %1451 = vmatprep.mubr.f32.mxu0 0.0
      %1452 = vmatmul.mubr.f32.gmra.mrb[0].mxu0 %v1379
      %v1453 = vpop.f32.mrb[0].mxu0
      %v1454 = vadd.f32 0.0, %v1453
      %v1455 = vpop.f32.mrb[0].mxu0
      %v1456 = vadd.f32 0.0, %v1455
      %1457 = vdwg.mxu0
      %1458 = vmatprep.subr.mxu0 0.0
      %1459 = vmatpush1.msra.mxu0 %v1385
      %1460 = vmatprep.subr.mxu0 0.0
      %1461 = vmatpush1.msra.mxu0 0.0
      %1462 = vmatprep.subr.mxu0 0.0
      %1463 = vmatpush1.msra.mxu0 0.0
      %1464 = vmatprep.subr.mxu0 0.0
      %1465 = vmatpush1.msra.mxu0 0.0
      %1466 = vmatprep.subr.mxu0 0.0
      %1467 = vmatpush1.msra.mxu0 0.0
      %1468 = vmatprep.subr.mxu0 0.0
      %1469 = vmatpush1.msra.mxu0 0.0
      %1470 = vmatprep.subr.mxu0 0.0
      %1471 = vmatpush1.msra.mxu0 0.0
      %1472 = vmatprep.subr.mxu0 0.0
      %1473 = vmatpush1.msra.mxu0 0.0
      %1474 = vmatprep.subr.mxu0 0.0
      %1475 = vmatpush1.msra.mxu0 0.0
      %1476 = vmatprep.subr.mxu0 0.0
      %1477 = vmatpush1.msra.mxu0 0.0
      %1478 = vmatprep.subr.mxu0 0.0
      %1479 = vmatpush1.msra.mxu0 0.0
      %1480 = vmatprep.subr.mxu0 0.0
      %1481 = vmatpush1.msra.mxu0 0.0
      %1482 = vmatprep.subr.mxu0 0.0
      %1483 = vmatpush1.msra.mxu0 0.0
      %1484 = vmatprep.subr.mxu0 0.0
      %1485 = vmatpush1.msra.mxu0 0.0
      %1486 = vmatprep.subr.mxu0 0.0
      %1487 = vmatpush1.msra.mxu0 0.0
      %1488 = vmatprep.subr.mxu0 0.0
      %1489 = vmatpush1.msra.mxu0 0.0
      %1490 = vmatprep.subr.mxu0 0.0
      %1491 = vmatpush1.msra.mxu0 0.0
      %1492 = vmatprep.subr.mxu0 0.0
      %1493 = vmatpush1.msra.mxu0 0.0
      %1494 = vmatprep.subr.mxu0 0.0
      %1495 = vmatpush1.msra.mxu0 0.0
      %1496 = vmatprep.subr.mxu0 0.0
      %1497 = vmatpush1.msra.mxu0 0.0
      %1498 = vmatprep.subr.mxu0 0.0
      %1499 = vmatpush1.msra.mxu0 0.0
      %1500 = vmatprep.subr.mxu0 0.0
      %1501 = vmatpush1.msra.mxu0 0.0
      %1502 = vmatprep.subr.mxu0 0.0
      %1503 = vmatpush1.msra.mxu0 0.0
      %1504 = vmatprep.subr.mxu0 0.0
      %1505 = vmatpush1.msra.mxu0 0.0
      %1506 = vmatprep.subr.mxu0 0.0
      %1507 = vmatpush1.msra.mxu0 0.0
      %1508 = vmatprep.subr.mxu0 0.0
      %1509 = vmatpush1.msra.mxu0 0.0
      %1510 = vmatprep.subr.mxu0 0.0
      %1511 = vmatpush1.msra.mxu0 0.0
      %1512 = vmatprep.subr.mxu0 0.0
      %1513 = vmatpush1.msra.mxu0 0.0
      %1514 = vmatprep.subr.mxu0 0.0
      %1515 = vmatpush1.msra.mxu0 0.0
      %1516 = vmatprep.subr.mxu0 0.0
      %1517 = vmatpush1.msra.mxu0 0.0
      %1518 = vmatprep.subr.mxu0 0.0
      %1519 = vmatpush1.msra.mxu0 0.0
      %1520 = vmatprep.subr.mxu0 0.0
      %1521 = vmatpush1.msra.mxu0 0.0
      %1522 = vmatprep.mubr.f32.mxu0 0.0
      %1523 = vmatmul.mubr.f32.gmra.mrb[0].mxu0 %v1379
      %v1524 = vpop.f32.mrb[0].mxu0
      %v1525 = vadd.f32 0.0, %v1524
      %v1526 = vpop.f32.mrb[0].mxu0
      %1527 = vdwg.mxu0
      %v1528 = vadd.f32 %v1359, %v1454
      %v1529 = vadd.f32 %v1360, %v1456
      %v1530 = vadd.f32 %v1361, %v1525
      %v1531 = vld [vmem:[%s192] sm:$0xff]
      %v1532 = vld [vmem:[%s192 + $0x8] sm:$0xf]
      %s1533 = scalar_lea.vmem %s1, 64
      %v1534 = vld [vmem:[%s1533] sm:$0xff]
      %v1537 = vcombine.high %v1531, %v1531
      %1538 = vrot.lane.b32.xlu0 %v1531, 90
      %v1539 = vpop.permute.xlu0 %1538
      %1540 = vrot.lane.b32.xlu0 %v1537, 90
      %v1541 = vpop.permute.xlu0 %1540
      %1542 = vrot.lane.b32.xlu0 %v1532, 90
      %v1543 = vpop.permute.xlu0 %1542
      %vm1544 = vcmask 736256
      %v1545 = vsel %vm1544, %v1539, %v1541
      %v1546 = vsel %vm1544, %v1541, %v1543
      %v1548 = vsel %vm215, %v1534, 0
      %v1550 = vsel %vm219, %v1545, 0
      %v1552 = vsel %vm219, %v1546, 0
      %v1554 = vsel %vm219, %v1543, 0
      %1556 = vmatprep.subr.mxu0 %v1552
      %1557 = vmatpush1.msra.mxu0 %v1550
      %1558 = vmatprep.subr.mxu0 0.0
      %1559 = vmatpush1.msra.mxu0 0.0
      %1560 = vmatprep.subr.mxu0 0.0
      %1561 = vmatpush1.msra.mxu0 0.0
      %1562 = vmatprep.subr.mxu0 0.0
      %1563 = vmatpush1.msra.mxu0 0.0
      %1564 = vmatprep.subr.mxu0 0.0
      %1565 = vmatpush1.msra.mxu0 0.0
      %1566 = vmatprep.subr.mxu0 0.0
      %1567 = vmatpush1.msra.mxu0 0.0
      %1568 = vmatprep.subr.mxu0 0.0
      %1569 = vmatpush1.msra.mxu0 0.0
      %1570 = vmatprep.subr.mxu0 0.0
      %1571 = vmatpush1.msra.mxu0 0.0
      %1572 = vmatprep.subr.mxu0 0.0
      %1573 = vmatpush1.msra.mxu0 0.0
      %1574 = vmatprep.subr.mxu0 0.0
      %1575 = vmatpush1.msra.mxu0 0.0
      %1576 = vmatprep.subr.mxu0 0.0
      %1577 = vmatpush1.msra.mxu0 0.0
      %1578 = vmatprep.subr.mxu0 0.0
      %1579 = vmatpush1.msra.mxu0 0.0
      %1580 = vmatprep.subr.mxu0 0.0
      %1581 = vmatpush1.msra.mxu0 0.0
      %1582 = vmatprep.subr.mxu0 0.0
      %1583 = vmatpush1.msra.mxu0 0.0
      %1584 = vmatprep.subr.mxu0 0.0
      %1585 = vmatpush1.msra.mxu0 0.0
      %1586 = vmatprep.subr.mxu0 0.0
      %1587 = vmatpush1.msra.mxu0 0.0
      %1588 = vmatprep.subr.mxu0 0.0
      %1589 = vmatpush1.msra.mxu0 0.0
      %1590 = vmatprep.subr.mxu0 0.0
      %1591 = vmatpush1.msra.mxu0 0.0
      %1592 = vmatprep.subr.mxu0 0.0
      %1593 = vmatpush1.msra.mxu0 0.0
      %1594 = vmatprep.subr.mxu0 0.0
      %1595 = vmatpush1.msra.mxu0 0.0
      %1596 = vmatprep.subr.mxu0 0.0
      %1597 = vmatpush1.msra.mxu0 0.0
      %1598 = vmatprep.subr.mxu0 0.0
      %1599 = vmatpush1.msra.mxu0 0.0
      %1600 = vmatprep.subr.mxu0 0.0
      %1601 = vmatpush1.msra.mxu0 0.0
      %1602 = vmatprep.subr.mxu0 0.0
      %1603 = vmatpush1.msra.mxu0 0.0
      %1604 = vmatprep.subr.mxu0 0.0
      %1605 = vmatpush1.msra.mxu0 0.0
      %1606 = vmatprep.subr.mxu0 0.0
      %1607 = vmatpush1.msra.mxu0 0.0
      %1608 = vmatprep.subr.mxu0 0.0
      %1609 = vmatpush1.msra.mxu0 0.0
      %1610 = vmatprep.subr.mxu0 0.0
      %1611 = vmatpush1.msra.mxu0 0.0
      %1612 = vmatprep.subr.mxu0 0.0
      %1613 = vmatpush1.msra.mxu0 0.0
      %1614 = vmatprep.subr.mxu0 0.0
      %1615 = vmatpush1.msra.mxu0 0.0
      %1616 = vmatprep.subr.mxu0 0.0
      %1617 = vmatpush1.msra.mxu0 0.0
      %1618 = vmatprep.subr.mxu0 0.0
      %1619 = vmatpush1.msra.mxu0 0.0
      %1620 = vmatprep.mubr.f32.mxu0 0.0
      %1621 = vmatmul.mubr.f32.gmra.mrb[0].mxu0 %v1548
      %v1622 = vpop.f32.mrb[0].mxu0
      %v1623 = vadd.f32 0.0, %v1622
      %v1624 = vpop.f32.mrb[0].mxu0
      %v1625 = vadd.f32 0.0, %v1624
      %1626 = vdwg.mxu0
      %1627 = vmatprep.subr.mxu0 0.0
      %1628 = vmatpush1.msra.mxu0 %v1554
      %1629 = vmatprep.subr.mxu0 0.0
      %1630 = vmatpush1.msra.mxu0 0.0
      %1631 = vmatprep.subr.mxu0 0.0
      %1632 = vmatpush1.msra.mxu0 0.0
      %1633 = vmatprep.subr.mxu0 0.0
      %1634 = vmatpush1.msra.mxu0 0.0
      %1635 = vmatprep.subr.mxu0 0.0
      %1636 = vmatpush1.msra.mxu0 0.0
      %1637 = vmatprep.subr.mxu0 0.0
      %1638 = vmatpush1.msra.mxu0 0.0
      %1639 = vmatprep.subr.mxu0 0.0
      %1640 = vmatpush1.msra.mxu0 0.0
      %1641 = vmatprep.subr.mxu0 0.0
      %1642 = vmatpush1.msra.mxu0 0.0
      %1643 = vmatprep.subr.mxu0 0.0
      %1644 = vmatpush1.msra.mxu0 0.0
      %1645 = vmatprep.subr.mxu0 0.0
      %1646 = vmatpush1.msra.mxu0 0.0
      %1647 = vmatprep.subr.mxu0 0.0
      %1648 = vmatpush1.msra.mxu0 0.0
      %1649 = vmatprep.subr.mxu0 0.0
      %1650 = vmatpush1.msra.mxu0 0.0
      %1651 = vmatprep.subr.mxu0 0.0
      %1652 = vmatpush1.msra.mxu0 0.0
      %1653 = vmatprep.subr.mxu0 0.0
      %1654 = vmatpush1.msra.mxu0 0.0
      %1655 = vmatprep.subr.mxu0 0.0
      %1656 = vmatpush1.msra.mxu0 0.0
      %1657 = vmatprep.subr.mxu0 0.0
      %1658 = vmatpush1.msra.mxu0 0.0
      %1659 = vmatprep.subr.mxu0 0.0
      %1660 = vmatpush1.msra.mxu0 0.0
      %1661 = vmatprep.subr.mxu0 0.0
      %1662 = vmatpush1.msra.mxu0 0.0
      %1663 = vmatprep.subr.mxu0 0.0
      %1664 = vmatpush1.msra.mxu0 0.0
      %1665 = vmatprep.subr.mxu0 0.0
      %1666 = vmatpush1.msra.mxu0 0.0
      %1667 = vmatprep.subr.mxu0 0.0
      %1668 = vmatpush1.msra.mxu0 0.0
      %1669 = vmatprep.subr.mxu0 0.0
      %1670 = vmatpush1.msra.mxu0 0.0
      %1671 = vmatprep.subr.mxu0 0.0
      %1672 = vmatpush1.msra.mxu0 0.0
      %1673 = vmatprep.subr.mxu0 0.0
      %1674 = vmatpush1.msra.mxu0 0.0
      %1675 = vmatprep.subr.mxu0 0.0
      %1676 = vmatpush1.msra.mxu0 0.0
      %1677 = vmatprep.subr.mxu0 0.0
      %1678 = vmatpush1.msra.mxu0 0.0
      %1679 = vmatprep.subr.mxu0 0.0
      %1680 = vmatpush1.msra.mxu0 0.0
      %1681 = vmatprep.subr.mxu0 0.0
      %1682 = vmatpush1.msra.mxu0 0.0
      %1683 = vmatprep.subr.mxu0 0.0
      %1684 = vmatpush1.msra.mxu0 0.0
      %1685 = vmatprep.subr.mxu0 0.0
      %1686 = vmatpush1.msra.mxu0 0.0
      %1687 = vmatprep.subr.mxu0 0.0
      %1688 = vmatpush1.msra.mxu0 0.0
      %1689 = vmatprep.subr.mxu0 0.0
      %1690 = vmatpush1.msra.mxu0 0.0
      %1691 = vmatprep.mubr.f32.mxu0 0.0
      %1692 = vmatmul.mubr.f32.gmra.mrb[0].mxu0 %v1548
      %v1693 = vpop.f32.mrb[0].mxu0
      %v1694 = vadd.f32 0.0, %v1693
      %v1695 = vpop.f32.mrb[0].mxu0
      %1696 = vdwg.mxu0
      %v1697 = vadd.f32 %v1528, %v1623
      %v1698 = vadd.f32 %v1529, %v1625
      %v1699 = vadd.f32 %v1530, %v1694
      %v1700 = vld [vmem:[%s3] sm:$0xff]
      %1702 = vset.pattern.permute.xlu0 0
      %1703 = vperm.xlu0 %1702, %v1700
      %v1704 = vpop.permute.xlu0 %1703
      %v1706 = vadd.f32 %v1697, %v1704
      %v1707 = vadd.f32 %v1698, %v1704
      %v1708 = vadd.f32 %v1699, %v1704
      %v1709 = vmax.f32 %v1706, 0.0
      %v1710 = vmax.f32 %v1707, 0.0
      %v1711 = vmax.f32 %v1708, 0.0
      %v1712 = vld [vmem:[%s2] sm:$0xff]
      %1713 = vset.pattern.permute.xlu0 1
      %1714 = vperm.xlu0 %1713, %v1700
      %v1715 = vpop.permute.xlu0 %1714
      %vm1717 = vcmask 64512
      %v1719 = vsel %vm1717, %v1712, 0
      %1721 = vmatprep.subr.mxu0 %v1710
      %1722 = vmatpush1.msra.mxu0 %v1709
      %1723 = vmatprep.subr.mxu0 0.0
      %1724 = vmatpush1.msra.mxu0 0.0
      %1725 = vmatprep.subr.mxu0 0.0
      %1726 = vmatpush1.msra.mxu0 0.0
      %1727 = vmatprep.subr.mxu0 0.0
      %1728 = vmatpush1.msra.mxu0 0.0
      %1729 = vmatprep.subr.mxu0 0.0
      %1730 = vmatpush1.msra.mxu0 0.0
      %1731 = vmatprep.subr.mxu0 0.0
      %1732 = vmatpush1.msra.mxu0 0.0
      %1733 = vmatprep.subr.mxu0 0.0
      %1734 = vmatpush1.msra.mxu0 0.0
      %1735 = vmatprep.subr.mxu0 0.0
      %1736 = vmatpush1.msra.mxu0 0.0
      %1737 = vmatprep.subr.mxu0 0.0
      %1738 = vmatpush1.msra.mxu0 0.0
      %1739 = vmatprep.subr.mxu0 0.0
      %1740 = vmatpush1.msra.mxu0 0.0
      %1741 = vmatprep.subr.mxu0 0.0
      %1742 = vmatpush1.msra.mxu0 0.0
      %1743 = vmatprep.subr.mxu0 0.0
      %1744 = vmatpush1.msra.mxu0 0.0
      %1745 = vmatprep.subr.mxu0 0.0
      %1746 = vmatpush1.msra.mxu0 0.0
      %1747 = vmatprep.subr.mxu0 0.0
      %1748 = vmatpush1.msra.mxu0 0.0
      %1749 = vmatprep.subr.mxu0 0.0
      %1750 = vmatpush1.msra.mxu0 0.0
      %1751 = vmatprep.subr.mxu0 0.0
      %1752 = vmatpush1.msra.mxu0 0.0
      %1753 = vmatprep.subr.mxu0 0.0
      %1754 = vmatpush1.msra.mxu0 0.0
      %1755 = vmatprep.subr.mxu0 0.0
      %1756 = vmatpush1.msra.mxu0 0.0
      %1757 = vmatprep.subr.mxu0 0.0
      %1758 = vmatpush1.msra.mxu0 0.0
      %1759 = vmatprep.subr.mxu0 0.0
      %1760 = vmatpush1.msra.mxu0 0.0
      %1761 = vmatprep.subr.mxu0 0.0
      %1762 = vmatpush1.msra.mxu0 0.0
      %1763 = vmatprep.subr.mxu0 0.0
      %1764 = vmatpush1.msra.mxu0 0.0
      %1765 = vmatprep.subr.mxu0 0.0
      %1766 = vmatpush1.msra.mxu0 0.0
      %1767 = vmatprep.subr.mxu0 0.0
      %1768 = vmatpush1.msra.mxu0 0.0
      %1769 = vmatprep.subr.mxu0 0.0
      %1770 = vmatpush1.msra.mxu0 0.0
      %1771 = vmatprep.subr.mxu0 0.0
      %1772 = vmatpush1.msra.mxu0 0.0
      %1773 = vmatprep.subr.mxu0 0.0
      %1774 = vmatpush1.msra.mxu0 0.0
      %1775 = vmatprep.subr.mxu0 0.0
      %1776 = vmatpush1.msra.mxu0 0.0
      %1777 = vmatprep.subr.mxu0 0.0
      %1778 = vmatpush1.msra.mxu0 0.0
      %1779 = vmatprep.subr.mxu0 0.0
      %1780 = vmatpush1.msra.mxu0 0.0
      %1781 = vmatprep.subr.mxu0 0.0
      %1782 = vmatpush1.msra.mxu0 0.0
      %1783 = vmatprep.subr.mxu0 0.0
      %1784 = vmatpush1.msra.mxu0 0.0
      %1785 = vmatprep.mubr.f32.mxu0 0.0
      %1786 = vmatmul.mubr.f32.gmra.mrb[0].mxu0 %v1719
      %v1787 = vpop.f32.mrb[0].mxu0
      %v1788 = vadd.f32 %v1715, %v1787
      %v1789 = vpop.f32.mrb[0].mxu0
      %v1790 = vadd.f32 %v1715, %v1789
      %1791 = vdwg.mxu0
      %1792 = vmatprep.subr.mxu0 0.0
      %1793 = vmatpush1.msra.mxu0 %v1711
      %1794 = vmatprep.subr.mxu0 0.0
      %1795 = vmatpush1.msra.mxu0 0.0
      %1796 = vmatprep.subr.mxu0 0.0
      %1797 = vmatpush1.msra.mxu0 0.0
      %1798 = vmatprep.subr.mxu0 0.0
      %1799 = vmatpush1.msra.mxu0 0.0
      %1800 = vmatprep.subr.mxu0 0.0
      %1801 = vmatpush1.msra.mxu0 0.0
      %1802 = vmatprep.subr.mxu0 0.0
      %1803 = vmatpush1.msra.mxu0 0.0
      %1804 = vmatprep.subr.mxu0 0.0
      %1805 = vmatpush1.msra.mxu0 0.0
      %1806 = vmatprep.subr.mxu0 0.0
      %1807 = vmatpush1.msra.mxu0 0.0
      %1808 = vmatprep.subr.mxu0 0.0
      %1809 = vmatpush1.msra.mxu0 0.0
      %1810 = vmatprep.subr.mxu0 0.0
      %1811 = vmatpush1.msra.mxu0 0.0
      %1812 = vmatprep.subr.mxu0 0.0
      %1813 = vmatpush1.msra.mxu0 0.0
      %1814 = vmatprep.subr.mxu0 0.0
      %1815 = vmatpush1.msra.mxu0 0.0
      %1816 = vmatprep.subr.mxu0 0.0
      %1817 = vmatpush1.msra.mxu0 0.0
      %1818 = vmatprep.subr.mxu0 0.0
      %1819 = vmatpush1.msra.mxu0 0.0
      %1820 = vmatprep.subr.mxu0 0.0
      %1821 = vmatpush1.msra.mxu0 0.0
      %1822 = vmatprep.subr.mxu0 0.0
      %1823 = vmatpush1.msra.mxu0 0.0
      %1824 = vmatprep.subr.mxu0 0.0
      %1825 = vmatpush1.msra.mxu0 0.0
      %1826 = vmatprep.subr.mxu0 0.0
      %1827 = vmatpush1.msra.mxu0 0.0
      %1828 = vmatprep.subr.mxu0 0.0
      %1829 = vmatpush1.msra.mxu0 0.0
      %1830 = vmatprep.subr.mxu0 0.0
      %1831 = vmatpush1.msra.mxu0 0.0
      %1832 = vmatprep.subr.mxu0 0.0
      %1833 = vmatpush1.msra.mxu0 0.0
      %1834 = vmatprep.subr.mxu0 0.0
      %1835 = vmatpush1.msra.mxu0 0.0
      %1836 = vmatprep.subr.mxu0 0.0
      %1837 = vmatpush1.msra.mxu0 0.0
      %1838 = vmatprep.subr.mxu0 0.0
      %1839 = vmatpush1.msra.mxu0 0.0
      %1840 = vmatprep.subr.mxu0 0.0
      %1841 = vmatpush1.msra.mxu0 0.0
      %1842 = vmatprep.subr.mxu0 0.0
      %1843 = vmatpush1.msra.mxu0 0.0
      %1844 = vmatprep.subr.mxu0 0.0
      %1845 = vmatpush1.msra.mxu0 0.0
      %1846 = vmatprep.subr.mxu0 0.0
      %1847 = vmatpush1.msra.mxu0 0.0
      %1848 = vmatprep.subr.mxu0 0.0
      %1849 = vmatpush1.msra.mxu0 0.0
      %1850 = vmatprep.subr.mxu0 0.0
      %1851 = vmatpush1.msra.mxu0 0.0
      %1852 = vmatprep.subr.mxu0 0.0
      %1853 = vmatpush1.msra.mxu0 0.0
      %1854 = vmatprep.subr.mxu0 0.0
      %1855 = vmatpush1.msra.mxu0 0.0
      %1856 = vmatprep.mubr.f32.mxu0 0.0
      %1857 = vmatmul.mubr.f32.gmra.mrb[0].mxu0 %v1719
      %v1858 = vpop.f32.mrb[0].mxu0
      %v1859 = vadd.f32 %v1715, %v1858
      %v1860 = vpop.f32.mrb[0].mxu0
      %1861 = vdwg.mxu0
      %v1862 = vmax.f32 %v1788, 0.0
      %v1863 = vmax.f32 %v1790, 0.0
      %v1864 = vmax.f32 %v1859, 0.0
      %1865 = vst [vmem:[%s197] sm:$0xff] %v1862
      %1866 = vst [vmem:[%s197 + $0x8] sm:$0xff] %v1863
      %vm1867 = vcmask 556032
      %1868 = vst.msk [vmem:[%s197 + $0x10] sm:$0xff] %vm1867, %v1864
      %p1869 = scmp.lt.s32.totalorder %s15, 1
      %s1870 = scalar_select %p1869, %s15, 1
      %s1871 = smul.addr %s1870, 3
      %s1872 = smul.addr %s1871, 8
      %s1873 = scalar_lea.vmem %s4, %s1872
      // Predicated region
      $region37: #{dwconv_block.1} parent=35 // pred_check
        %p1874 = pneg %p122
      $region38: #{dwconv_block.1} parent=35 // pred_check_branch
        %1876 = sbr.rel (%p1874) target = $region40
      $region39: #{dwconv_block.1} parent=35 // pred_region
        _
      $region40: #{dwconv_block.1} parent=35 // pred_fallthru
        _
    $region36: #{dwconv_block.1} parent=5 // pred_fallthru
      _
    %p1877 = scmp.le.s32.totalorder 2, %s10
    // Predicated region
    $region41: #{dwconv_block.1} parent=5 // pred_check
      %p1878 = pneg %p1877
    $region42: #{dwconv_block.1} parent=5 // pred_check_branch
      %1880 = sbr.rel (%p1878) target = $region44
    $region43: #{dwconv_block.1} parent=5 // pred_region
      %s1881 = ssub.s32 %s10, 2
      // Predicated region
      $region45: #{dwconv_block.1} parent=43 // pred_check
        %p1882 = pneg %p128
      $region46: #{dwconv_block.1} parent=43 // pred_check_branch
        %1884 = sbr.rel (%p1882) target = $region48
      $region47: #{dwconv_block.1} parent=43 // pred_region
        %p1885 = scmp.lt.s32.totalorder %s16, 1
        %s1886 = scalar_select %p1885, %s16, 1
        %s1887 = smul.addr %s1886, 3
        %s1888 = smul.addr %s1887, 8
        %s1889 = scalar_lea.vmem %s4, %s1888
      $region48: #{dwconv_block.1} parent=43 // pred_fallthru
        _
    $region44: #{dwconv_block.1} parent=5 // pred_fallthru
      _
  $region6: #{dwconv_block.1} parent=0 // loop_footer
    %s14 = sadd.s32 1, %s10
  $region7: #{dwconv_block.1} parent=0 // loop_footer_branch
    %9 = sbr.rel target = $region3
  $region8: #{dwconv_block.1} parent=0 // loop_exit
    _

</llo_original>
